<compile_context>
chip_gen: v5e
topology: v5e:2x2
jax: 0.10.0
libtpu: 0.0.40
codegen_flags: <defaults>
</compile_context>

<pallas_src>
import functools
import math

import jax
import jax.numpy as jnp
from jax.experimental import pallas as pl
from jax.experimental.pallas import tpu as pltpu

# ---- KANLinear hyper-parameters (match the PyTorch module defaults) ----
IN_FEATURES = 32
OUT_FEATURES = 16
GRID_SIZE = 5
SPLINE_ORDER = 3
GRID_RANGE = (-1.0, 1.0)
N_COEF = GRID_SIZE + SPLINE_ORDER              # number of B-spline basis funcs
N_GRID = GRID_SIZE + 2 * SPLINE_ORDER + 1      # number of grid knots per feature
PRUNE_THRESHOLD = 0.01                         # > 0 -> mask is applied in forward


def _round_up(x, m):
    return (x + m - 1) // m * m


def _kan_kernel(x_ref, grid_ref, rec_ref, wb_ref, ws_ref, out_ref,
                *, spline_order, n_grid):
    """One row-tile of the KANLinear forward, rows in the lane axis.

    x_ref    : (IN, TB)              input rows, transposed
    grid_ref : (N_GRID, IN)          spline knots (knot axis first)
    rec_ref  : (2*SO, N_GRID, IN)    precomputed knot-difference reciprocals
    wb_ref   : (OUT, IN)             base weight (prune mask folded in)
    ws_ref   : (OUT, N_COEF*IN)      scaled spline weight, (coef, in)-flattened, masked
    out_ref  : (OUT, TB)
    """
    xT = x_ref[...]                                    # (IN, TB) f32
    g = grid_ref[...]                                  # (NG, IN)
    rec = rec_ref[...]                                 # (2*SO, NG, IN)
    g3 = g[:, :, None]                                 # (NG, IN, 1)
    xe = xT[None, :, :]                                # (1, IN, TB)

    # ---- base path: SiLU(x) @ W_base^T  computed as  W_base @ SiLU(x)^T ----
    # exp on EUP, reciprocal lowered to the full-precision divide path.
    silu = xT * pl.reciprocal(1.0 + jnp.exp(-xT), approx=False)   # (IN, TB)
    acc = jnp.dot(wb_ref[...], silu,
                  preferred_element_type=jnp.float32)  # (OUT, TB)

    # ---- B-spline bases (Cox-de-Boor), layout (intervals, IN, TB) ----
    bases = jnp.logical_and(xe >= g3[:-1], xe < g3[1:]).astype(xT.dtype)
    for k in range(1, spline_order + 1):               # statically unrolled (3 levels)
        n_int = n_grid - k - 1
        lrec = rec[2 * (k - 1), :n_int, :, None]       # (n_int, IN, 1)
        rrec = rec[2 * (k - 1) + 1, :n_int, :, None]   # (n_int, IN, 1)
        left = (xe - g3[:-(k + 1)]) * lrec * bases[:-1]
        right = (g3[k + 1:] - xe) * rrec * bases[1:]
        bases = left + right                           # (n_int, IN, TB)
    # bases: (N_COEF, IN, TB)

    # ---- spline path: single wide-K MXU matmul (IN=32 is 8-aligned, so the
    #      (coef, in) sublane merge is a layout no-op). ----
    bases_flat = bases.reshape(bases.shape[0] * bases.shape[1],
                               bases.shape[2])         # (N_COEF*IN, TB)
    acc = acc + jnp.dot(ws_ref[...], bases_flat,
                        preferred_element_type=jnp.float32)

    out_ref[...] = acc.astype(out_ref.dtype)
    # TODO(synk): running activity counters (self.counts / self.n) are host-side
    # numpy side effects in the PyTorch module and are not reproduced here.


def kan_linear_forward(x, grid, base_weight, spline_weight, spline_scaler, mask,
                       *, row_tile=512):
    """Pallas-backed KANLinear.forward (numerically matches the PyTorch forward)."""
    orig_shape = x.shape
    xf = x.reshape(-1, IN_FEATURES).astype(jnp.float32)
    n_rows = xf.shape[0]

    # Rows go into the lane axis; tile is a multiple of 128, rows are padded.
    tile = min(_round_up(row_tile, 128), _round_up(max(n_rows, 1), 128))
    n_pad = _round_up(n_rows, tile)
    xT = jnp.pad(xf, ((0, n_pad - n_rows), (0, 0))).T          # (IN, n_pad)

    # ---- host-side parameter prep (layout plumbing, not compute hoisting) ----
    mask_f = mask.astype(jnp.float32)
    w_base = base_weight.astype(jnp.float32) * mask_f[:, None]            # (OUT, IN)
    sw = spline_weight.astype(jnp.float32) * spline_scaler[:, :, None]    # (OUT, IN, C)
    # Kernel bases are (coef, in)-ordered -> flatten the weight the same way.
    w_spline = (jnp.transpose(sw, (0, 2, 1))
                .reshape(OUT_FEATURES, N_COEF * IN_FEATURES)
                * mask_f[:, None])                                        # (OUT, C*IN)

    grid_t = grid.T.astype(jnp.float32)                                   # (NG, IN)
    # Precompute knot-difference reciprocals so the kernel hot loop has no divides.
    # NOTE: assumes strictly increasing knots (true for the uniform init grid;
    # a repeated knot after grid adaptation would need an epsilon guard here).
    rec = jnp.zeros((2 * SPLINE_ORDER, N_GRID, IN_FEATURES), jnp.float32)
    for k in range(1, SPLINE_ORDER + 1):
        n_int = N_GRID - k - 1
        rec = rec.at[2 * (k - 1), :n_int].set(
            1.0 / (grid_t[k:-1] - grid_t[:-(k + 1)]))
        rec = rec.at[2 * (k - 1) + 1, :n_int].set(
            1.0 / (grid_t[k + 1:] - grid_t[1:-k]))

    kernel = functools.partial(_kan_kernel,
                               spline_order=SPLINE_ORDER, n_grid=N_GRID)

    out_t = pl.pallas_call(
        kernel,
        out_shape=jax.ShapeDtypeStruct((OUT_FEATURES, n_pad), jnp.float32),
        grid_spec=pltpu.PrefetchScalarGridSpec(
            num_scalar_prefetch=0,
            grid=(n_pad // tile,),
            in_specs=[
                pl.BlockSpec((IN_FEATURES, tile), lambda i: (0, i)),
                pl.BlockSpec((N_GRID, IN_FEATURES), lambda i: (0, 0)),
                pl.BlockSpec((2 * SPLINE_ORDER, N_GRID, IN_FEATURES),
                             lambda i: (0, 0, 0)),
                pl.BlockSpec((OUT_FEATURES, IN_FEATURES), lambda i: (0, 0)),
                pl.BlockSpec((OUT_FEATURES, N_COEF * IN_FEATURES),
                             lambda i: (0, 0)),
            ],
            out_specs=pl.BlockSpec((OUT_FEATURES, tile), lambda i: (0, i)),
        ),
        compiler_params=pltpu.CompilerParams(
            dimension_semantics=("parallel",)),   # megacore-friendly on v7x
    )(xT, grid_t, rec, w_base, w_spline)

    out = out_t.T[:n_rows]                                     # (n_rows, OUT)
    return out.reshape(*orig_shape[:-1], OUT_FEATURES)


def ref_forward(x, grid, base_weight, spline_weight, spline_scaler, mask):
    """Pure-JAX reference mirroring the PyTorch forward (for verification)."""
    orig_shape = x.shape
    xf = x.reshape(-1, IN_FEATURES)
    silu = xf * jax.nn.sigmoid(xf)
    base_out = silu @ base_weight.T
    xe = xf[:, :, None]
    bases = jnp.logical_and(xe >= grid[None, :, :-1],
                            xe < grid[None, :, 1:]).astype(xf.dtype)
    for k in range(1, SPLINE_ORDER + 1):
        bases = ((xe - grid[None, :, :-(k + 1)])
                 / (grid[None, :, k:-1] - grid[None, :, :-(k + 1)])
                 * bases[:, :, :-1]
                 + (grid[None, :, k + 1:] - xe)
                 / (grid[None, :, k + 1:] - grid[None, :, 1:-k])
                 * bases[:, :, 1:])
    sw = spline_weight * spline_scaler[:, :, None]
    spline_out = bases.reshape(xf.shape[0], -1) @ sw.reshape(OUT_FEATURES, -1).T
    out = (base_out + spline_out) * mask.astype(xf.dtype)[None, :]
    return out.reshape(*orig_shape[:-1], OUT_FEATURES)


def init_params(key):
    """Deterministic synthetic parameter init (shapes as in KANLinear.__init__)."""
    k1, k2, k3 = jax.random.split(key, 3)
    h = (GRID_RANGE[1] - GRID_RANGE[0]) / GRID_SIZE
    grid_1d = (jnp.arange(-SPLINE_ORDER, GRID_SIZE + SPLINE_ORDER + 1,
                          dtype=jnp.float32) * h + GRID_RANGE[0])
    grid = jnp.broadcast_to(grid_1d, (IN_FEATURES, N_GRID))          # (IN, NG)

    # kaiming-uniform-style bounds (synthetic; not the lstsq-based torch init)
    bound = 1.0 / math.sqrt(IN_FEATURES)
    base_weight = jax.random.uniform(k1, (OUT_FEATURES, IN_FEATURES),
                                     jnp.float32, -bound, bound)
    spline_weight = jax.random.uniform(k2, (OUT_FEATURES, IN_FEATURES, N_COEF),
                                       jnp.float32, -0.1, 0.1)
    spline_scaler = jax.random.uniform(k3, (OUT_FEATURES, IN_FEATURES),
                                       jnp.float32, -bound, bound)
    mask = jnp.ones((OUT_FEATURES,), dtype=jnp.bool_)
    return grid, base_weight, spline_weight, spline_scaler, mask


if __name__ == "__main__":
    key = jax.random.PRNGKey(0)
    kx, kp = jax.random.split(key)
    # x: (batch=2, seq=8, in_features=32) -> 16 rows after flattening
    x = jax.random.uniform(kx, (2, 8, IN_FEATURES), jnp.float32, -1.0, 1.0)
    grid, base_w, spline_w, spline_s, mask = init_params(kp)

    out = kan_linear_forward(x, grid, base_w, spline_w, spline_s, mask)
    out = jax.block_until_ready(out)

    ref = ref_forward(x, grid, base_w, spline_w, spline_s, mask)
    assert out.shape == (2, 8, OUT_FEATURES)
    # Tolerance slightly relaxed vs 1e-5: the fused wide-K MXU matmul changes
    # accumulation order relative to the XLA reference.
    assert jnp.allclose(out, ref, atol=1e-4, rtol=1e-4), "mismatch vs reference"
    print("KERNEL_OK")
</pallas_src>

<mosaic_0001>
module attributes {stable_mosaic.version = 11 : i64} {
  func.func @_kan_kernel(%arg0: i32, %arg1: memref<32x128xf32, #tpu.memory_space<vmem>>, %arg2: memref<12x32xf32, #tpu.memory_space<vmem>>, %arg3: memref<6x12x32xf32, #tpu.memory_space<vmem>>, %arg4: memref<16x32xf32, #tpu.memory_space<vmem>>, %arg5: memref<16x256xf32, #tpu.memory_space<vmem>>, %arg6: memref<16x128xf32, #tpu.memory_space<vmem>>) attributes {dimension_semantics = [#tpu.dimension_semantics<parallel>], iteration_bounds = array<i64: 1>, scalar_prefetch = 0 : i64, scratch_operands = 0 : i64, tpu.core_type = #tpu.core_type<tc>, window_params = [{transform_indices = @transform_0, window_bounds = array<i64: 32, 128>}, {pipeline_mode = #tpu.pipeline_mode<synchronous>, transform_indices = @transform_1, window_bounds = array<i64: 12, 32>}, {pipeline_mode = #tpu.pipeline_mode<synchronous>, transform_indices = @transform_2, window_bounds = array<i64: 6, 12, 32>}, {pipeline_mode = #tpu.pipeline_mode<synchronous>, transform_indices = @transform_3, window_bounds = array<i64: 16, 32>}, {pipeline_mode = #tpu.pipeline_mode<synchronous>, transform_indices = @transform_4, window_bounds = array<i64: 16, 256>}, {transform_indices = @transform_5, window_bounds = array<i64: 16, 128>}]} {
    %c0 = arith.constant 0 : index
    %c0_0 = arith.constant 0 : index
    %0 = vector.load %arg1[%c0, %c0_0] : memref<32x128xf32, #tpu.memory_space<vmem>>, vector<32x128xf32>
    %c0_1 = arith.constant 0 : index
    %c0_2 = arith.constant 0 : index
    %1 = vector.load %arg2[%c0_1, %c0_2] : memref<12x32xf32, #tpu.memory_space<vmem>>, vector<12x32xf32>
    %c0_3 = arith.constant 0 : index
    %c0_4 = arith.constant 0 : index
    %c0_5 = arith.constant 0 : index
    %2 = vector.load %arg3[%c0_3, %c0_4, %c0_5] : memref<6x12x32xf32, #tpu.memory_space<vmem>>, vector<6x12x32xf32>
    %3 = vector.shape_cast %1 : vector<12x32xf32> to vector<12x32x1xf32>
    %4 = vector.shape_cast %0 : vector<32x128xf32> to vector<1x32x128xf32>
    %cst = arith.constant 0.000000e+00 : f32
    %5 = vector.broadcast %cst : f32 to vector<32x128xf32>
    %6 = arith.subf %5, %0 : vector<32x128xf32>
    %7 = math.exp %6 : vector<32x128xf32>
    %cst_6 = arith.constant 1.000000e+00 : f32
    %8 = vector.broadcast %cst_6 : f32 to vector<32x128xf32>
    %9 = arith.addf %8, %7 : vector<32x128xf32>
    %10 = tpu.reciprocal %9 : vector<32x128xf32> -> vector<32x128xf32>
    %11 = arith.mulf %0, %10 : vector<32x128xf32>
    %c0_7 = arith.constant 0 : index
    %c0_8 = arith.constant 0 : index
    %12 = vector.load %arg4[%c0_7, %c0_8] : memref<16x32xf32, #tpu.memory_space<vmem>>, vector<16x32xf32>
    %cst_9 = arith.constant dense<0.000000e+00> : vector<16x128xf32>
    %13 = tpu.matmul %12, %11, %cst_9 {dimension_numbers = #tpu.dot_dimension_numbers<[1], [0], [0], [1], [0, 0, 1, 1], [], []>} : vector<16x32xf32>, vector<32x128xf32>, vector<16x128xf32> -> vector<16x128xf32>
    %14 = vector.extract_strided_slice %3 {offsets = [0, 0, 0], sizes = [11, 32, 1], strides = [1, 1, 1]} : vector<12x32x1xf32> to vector<11x32x1xf32>
    %15 = vector.broadcast %4 : vector<1x32x128xf32> to vector<11x32x128xf32>
    %16 = vector.broadcast %14 : vector<11x32x1xf32> to vector<11x32x128xf32>
    %17 = arith.cmpf oge, %15, %16 : vector<11x32x128xf32>
    %18 = vector.extract_strided_slice %3 {offsets = [1, 0, 0], sizes = [11, 32, 1], strides = [1, 1, 1]} : vector<12x32x1xf32> to vector<11x32x1xf32>
    %19 = vector.broadcast %4 : vector<1x32x128xf32> to vector<11x32x128xf32>
    %20 = vector.broadcast %18 : vector<11x32x1xf32> to vector<11x32x128xf32>
    %21 = arith.cmpf olt, %19, %20 : vector<11x32x128xf32>
    %22 = arith.andi %17, %21 : vector<11x32x128xi1>
    %23 = arith.extui %22 : vector<11x32x128xi1> to vector<11x32x128xi32>
    %24 = arith.sitofp %23 : vector<11x32x128xi32> to vector<11x32x128xf32>
    %25 = vector.extract_strided_slice %2 {offsets = [0, 0, 0], sizes = [1, 10, 32], strides = [1, 1, 1]} : vector<6x12x32xf32> to vector<1x10x32xf32>
    %26 = vector.shape_cast %25 : vector<1x10x32xf32> to vector<10x32xf32>
    %27 = vector.shape_cast %26 : vector<10x32xf32> to vector<10x32x1xf32>
    %28 = vector.extract_strided_slice %2 {offsets = [1, 0, 0], sizes = [1, 10, 32], strides = [1, 1, 1]} : vector<6x12x32xf32> to vector<1x10x32xf32>
    %29 = vector.shape_cast %28 : vector<1x10x32xf32> to vector<10x32xf32>
    %30 = vector.shape_cast %29 : vector<10x32xf32> to vector<10x32x1xf32>
    %31 = vector.extract_strided_slice %3 {offsets = [0, 0, 0], sizes = [10, 32, 1], strides = [1, 1, 1]} : vector<12x32x1xf32> to vector<10x32x1xf32>
    %32 = vector.broadcast %4 : vector<1x32x128xf32> to vector<10x32x128xf32>
    %33 = vector.broadcast %31 : vector<10x32x1xf32> to vector<10x32x128xf32>
    %34 = arith.subf %32, %33 : vector<10x32x128xf32>
    %35 = vector.broadcast %27 : vector<10x32x1xf32> to vector<10x32x128xf32>
    %36 = arith.mulf %34, %35 : vector<10x32x128xf32>
    %37 = vector.extract_strided_slice %24 {offsets = [0, 0, 0], sizes = [10, 32, 128], strides = [1, 1, 1]} : vector<11x32x128xf32> to vector<10x32x128xf32>
    %38 = arith.mulf %36, %37 : vector<10x32x128xf32>
    %39 = vector.extract_strided_slice %3 {offsets = [2, 0, 0], sizes = [10, 32, 1], strides = [1, 1, 1]} : vector<12x32x1xf32> to vector<10x32x1xf32>
    %40 = vector.broadcast %39 : vector<10x32x1xf32> to vector<10x32x128xf32>
    %41 = vector.broadcast %4 : vector<1x32x128xf32> to vector<10x32x128xf32>
    %42 = arith.subf %40, %41 : vector<10x32x128xf32>
    %43 = vector.broadcast %30 : vector<10x32x1xf32> to vector<10x32x128xf32>
    %44 = arith.mulf %42, %43 : vector<10x32x128xf32>
    %45 = vector.extract_strided_slice %24 {offsets = [1, 0, 0], sizes = [10, 32, 128], strides = [1, 1, 1]} : vector<11x32x128xf32> to vector<10x32x128xf32>
    %46 = arith.mulf %44, %45 : vector<10x32x128xf32>
    %47 = arith.addf %38, %46 : vector<10x32x128xf32>
    %48 = vector.extract_strided_slice %2 {offsets = [2, 0, 0], sizes = [1, 9, 32], strides = [1, 1, 1]} : vector<6x12x32xf32> to vector<1x9x32xf32>
    %49 = vector.shape_cast %48 : vector<1x9x32xf32> to vector<9x32xf32>
    %50 = vector.shape_cast %49 : vector<9x32xf32> to vector<9x32x1xf32>
    %51 = vector.extract_strided_slice %2 {offsets = [3, 0, 0], sizes = [1, 9, 32], strides = [1, 1, 1]} : vector<6x12x32xf32> to vector<1x9x32xf32>
    %52 = vector.shape_cast %51 : vector<1x9x32xf32> to vector<9x32xf32>
    %53 = vector.shape_cast %52 : vector<9x32xf32> to vector<9x32x1xf32>
    %54 = vector.extract_strided_slice %3 {offsets = [0, 0, 0], sizes = [9, 32, 1], strides = [1, 1, 1]} : vector<12x32x1xf32> to vector<9x32x1xf32>
    %55 = vector.broadcast %4 : vector<1x32x128xf32> to vector<9x32x128xf32>
    %56 = vector.broadcast %54 : vector<9x32x1xf32> to vector<9x32x128xf32>
    %57 = arith.subf %55, %56 : vector<9x32x128xf32>
    %58 = vector.broadcast %50 : vector<9x32x1xf32> to vector<9x32x128xf32>
    %59 = arith.mulf %57, %58 : vector<9x32x128xf32>
    %60 = vector.extract_strided_slice %47 {offsets = [0, 0, 0], sizes = [9, 32, 128], strides = [1, 1, 1]} : vector<10x32x128xf32> to vector<9x32x128xf32>
    %61 = arith.mulf %59, %60 : vector<9x32x128xf32>
    %62 = vector.extract_strided_slice %3 {offsets = [3, 0, 0], sizes = [9, 32, 1], strides = [1, 1, 1]} : vector<12x32x1xf32> to vector<9x32x1xf32>
    %63 = vector.broadcast %62 : vector<9x32x1xf32> to vector<9x32x128xf32>
    %64 = vector.broadcast %4 : vector<1x32x128xf32> to vector<9x32x128xf32>
    %65 = arith.subf %63, %64 : vector<9x32x128xf32>
    %66 = vector.broadcast %53 : vector<9x32x1xf32> to vector<9x32x128xf32>
    %67 = arith.mulf %65, %66 : vector<9x32x128xf32>
    %68 = vector.extract_strided_slice %47 {offsets = [1, 0, 0], sizes = [9, 32, 128], strides = [1, 1, 1]} : vector<10x32x128xf32> to vector<9x32x128xf32>
    %69 = arith.mulf %67, %68 : vector<9x32x128xf32>
    %70 = arith.addf %61, %69 : vector<9x32x128xf32>
    %71 = vector.extract_strided_slice %2 {offsets = [4, 0, 0], sizes = [1, 8, 32], strides = [1, 1, 1]} : vector<6x12x32xf32> to vector<1x8x32xf32>
    %72 = vector.shape_cast %71 : vector<1x8x32xf32> to vector<8x32xf32>
    %73 = vector.shape_cast %72 : vector<8x32xf32> to vector<8x32x1xf32>
    %74 = vector.extract_strided_slice %2 {offsets = [5, 0, 0], sizes = [1, 8, 32], strides = [1, 1, 1]} : vector<6x12x32xf32> to vector<1x8x32xf32>
    %75 = vector.shape_cast %74 : vector<1x8x32xf32> to vector<8x32xf32>
    %76 = vector.shape_cast %75 : vector<8x32xf32> to vector<8x32x1xf32>
    %77 = vector.extract_strided_slice %3 {offsets = [0, 0, 0], sizes = [8, 32, 1], strides = [1, 1, 1]} : vector<12x32x1xf32> to vector<8x32x1xf32>
    %78 = vector.broadcast %4 : vector<1x32x128xf32> to vector<8x32x128xf32>
    %79 = vector.broadcast %77 : vector<8x32x1xf32> to vector<8x32x128xf32>
    %80 = arith.subf %78, %79 : vector<8x32x128xf32>
    %81 = vector.broadcast %73 : vector<8x32x1xf32> to vector<8x32x128xf32>
    %82 = arith.mulf %80, %81 : vector<8x32x128xf32>
    %83 = vector.extract_strided_slice %70 {offsets = [0, 0, 0], sizes = [8, 32, 128], strides = [1, 1, 1]} : vector<9x32x128xf32> to vector<8x32x128xf32>
    %84 = arith.mulf %82, %83 : vector<8x32x128xf32>
    %85 = vector.extract_strided_slice %3 {offsets = [4, 0, 0], sizes = [8, 32, 1], strides = [1, 1, 1]} : vector<12x32x1xf32> to vector<8x32x1xf32>
    %86 = vector.broadcast %85 : vector<8x32x1xf32> to vector<8x32x128xf32>
    %87 = vector.broadcast %4 : vector<1x32x128xf32> to vector<8x32x128xf32>
    %88 = arith.subf %86, %87 : vector<8x32x128xf32>
    %89 = vector.broadcast %76 : vector<8x32x1xf32> to vector<8x32x128xf32>
    %90 = arith.mulf %88, %89 : vector<8x32x128xf32>
    %91 = vector.extract_strided_slice %70 {offsets = [1, 0, 0], sizes = [8, 32, 128], strides = [1, 1, 1]} : vector<9x32x128xf32> to vector<8x32x128xf32>
    %92 = arith.mulf %90, %91 : vector<8x32x128xf32>
    %93 = arith.addf %84, %92 : vector<8x32x128xf32>
    %94 = vector.shape_cast %93 : vector<8x32x128xf32> to vector<256x128xf32>
    %c0_10 = arith.constant 0 : index
    %c0_11 = arith.constant 0 : index
    %95 = vector.load %arg5[%c0_10, %c0_11] : memref<16x256xf32, #tpu.memory_space<vmem>>, vector<16x256xf32>
    %cst_12 = arith.constant dense<0.000000e+00> : vector<16x128xf32>
    %96 = tpu.matmul %95, %94, %cst_12 {dimension_numbers = #tpu.dot_dimension_numbers<[1], [0], [0], [1], [0, 0, 1, 1], [], []>} : vector<16x256xf32>, vector<256x128xf32>, vector<16x128xf32> -> vector<16x128xf32>
    %97 = arith.addf %13, %96 : vector<16x128xf32>
    %c0_13 = arith.constant 0 : index
    %c0_14 = arith.constant 0 : index
    %98 = vector.load %arg6[%c0_13, %c0_14] : memref<16x128xf32, #tpu.memory_space<vmem>>, vector<16x128xf32>
    tpu.vector_store %arg6[%c0_13, %c0_14], %97 {strides = array<i32>} : memref<16x128xf32, #tpu.memory_space<vmem>>, vector<16x128xf32>,
    return
  }
  func.func @transform_0(%arg0: i32) -> (i32, i32) {
    %c0_i32 = arith.constant 0 : i32
    %c0_i32_0 = arith.constant 0 : i32
    return %c0_i32, %arg0 : i32, i32
  }
  func.func @transform_1(%arg0: i32) -> (i32, i32) {
    %c0_i32 = arith.constant 0 : i32
    %c0_i32_0 = arith.constant 0 : i32
    %c0_i32_1 = arith.constant 0 : i32
    return %c0_i32, %c0_i32_0 : i32, i32
  }
  func.func @transform_2(%arg0: i32) -> (i32, i32, i32) {
    %c0_i32 = arith.constant 0 : i32
    %c0_i32_0 = arith.constant 0 : i32
    %c0_i32_1 = arith.constant 0 : i32
    %c0_i32_2 = arith.constant 0 : i32
    return %c0_i32, %c0_i32_0, %c0_i32_1 : i32, i32, i32
  }
  func.func @transform_3(%arg0: i32) -> (i32, i32) {
    %c0_i32 = arith.constant 0 : i32
    %c0_i32_0 = arith.constant 0 : i32
    %c0_i32_1 = arith.constant 0 : i32
    return %c0_i32, %c0_i32_0 : i32, i32
  }
  func.func @transform_4(%arg0: i32) -> (i32, i32) {
    %c0_i32 = arith.constant 0 : i32
    %c0_i32_0 = arith.constant 0 : i32
    %c0_i32_1 = arith.constant 0 : i32
    return %c0_i32, %c0_i32_0 : i32, i32
  }
  func.func @transform_5(%arg0: i32) -> (i32, i32) {
    %c0_i32 = arith.constant 0 : i32
    %c0_i32_0 = arith.constant 0 : i32
    return %c0_i32, %arg0 : i32, i32
  }
}

</mosaic_0001>

<llo_original>
// kernel: tpu_custom_call.1
$region0: #{tpu_custom_call.1}
  #allocation0 [shape = 'u32[]', space=smem, size = 0x4, offset = 0x4, fixed_abs, tag = 'smem constant byte address 0x4 - core index']
  #allocation1 [shape = 'u32[72,128]{1,0:T(1,128)}', space=vmem, size = 0x9000, scoped, tag = 'internal scratch']
  %s0 = inlined_call_operand.hbm [shape: f32[32,128], index: 0, kind: input, shape index: {}]
  %s1 = inlined_call_operand.hbm [shape: f32[12,32], index: 1, kind: input, shape index: {}]
  %s2 = inlined_call_operand.hbm [shape: f32[6,12,32], index: 2, kind: input, shape index: {}]
  %s3 = inlined_call_operand.hbm [shape: f32[16,32], index: 3, kind: input, shape index: {}]
  %s4 = inlined_call_operand.hbm [shape: f32[16,256], index: 4, kind: input, shape index: {}]
  %s5 = inlined_call_operand.hbm [shape: f32[16,128], index: 5, kind: output, shape index: {}]
  %s6 = sld [smem:[#allocation0]]
  $region50: #{tpu_custom_call.1} parent=0
    _
  %s8 = ssub.s32 1, %s6
  %s9 = scalar_select 0, %s8, %s6
  $region1: #{tpu_custom_call.1} parent=0
    #allocation2 [shape = 'u8[16384]{0}', space=vmem, size = 0x4000, scoped, tag = 'input window, operand 0, single buffered']
    #allocation3 [shape = 's32[1]{0}', space=sflag, size = 0x4, scoped, tag = 'scoped memory for tpu_custom_call.1']
    #allocation4 [shape = 's32[1]{0}', space=sflag, size = 0x4, scoped, tag = 'scoped memory for tpu_custom_call.1']
    #allocation5 [shape = 'u8[8192]{0}', space=vmem, size = 0x2000, scoped, tag = 'input window, operand 1, single buffered']
    #allocation6 [shape = 's32[1]{0}', space=sflag, size = 0x4, scoped, tag = 'scoped memory for tpu_custom_call.1']
    #allocation7 [shape = 'u8[49152]{0}', space=vmem, size = 0xc000, scoped, tag = 'input window, operand 2, single buffered']
    #allocation8 [shape = 'u8[8192]{0}', space=vmem, size = 0x2000, scoped, tag = 'input window, operand 3, single buffered']
    #allocation9 [shape = 's32[1]{0}', space=sflag, size = 0x4, scoped, tag = 'scoped memory for tpu_custom_call.1']
    #allocation10 [shape = 'u8[16384]{0}', space=vmem, size = 0x4000, scoped, tag = 'input window, operand 4, single buffered']
    #allocation11 [shape = 'u8[8192]{0}', space=vmem, size = 0x2000, scoped, tag = 'output window, operand 0, single buffered']
    %10 = vsyncpa [#allocation3], 0
    %11 = vsyncpa [#allocation6], 0
    %12 = vsyncpa [#allocation9], 0
    %13 = vsyncpa [#allocation4], 0
    // Predicated region
    $region2: #{tpu_custom_call.1} parent=1 // pred_check
      _
    $region3: #{tpu_custom_call.1} parent=1 // pred_check_branch
      %15 = sbr.rel (0) target = $region5
    $region4: #{tpu_custom_call.1} parent=1 // pred_region
      %17 = vsyncadd [#allocation3], 0
      %s18 = sshll.u32 %s0, 4
      %s19 = int_to_ptr.hbm [resolvable:$true] %s18
      %s20 = sshll.u32 [#allocation2], 4
      %s21 = int_to_ptr.vmem [resolvable:$true] %s20
      %26 = dma.hbm_to_vmem [thread:$0]  %s19, 512, %s21, [#allocation3], 128, 128, 8
    $region5: #{tpu_custom_call.1} parent=1 // pred_fallthru
      _
    // Predicated region
    $region6: #{tpu_custom_call.1} parent=1 // pred_check
      _
    $region7: #{tpu_custom_call.1} parent=1 // pred_check_branch
      %28 = sbr.rel (0) target = $region9
    $region8: #{tpu_custom_call.1} parent=1 // pred_region
      %30 = vsyncadd [#allocation6], 0
      %s31 = sshll.u32 %s1, 4
      %s32 = int_to_ptr.hbm [resolvable:$true] %s31
      %s33 = sshll.u32 [#allocation5], 4
      %s34 = int_to_ptr.vmem [resolvable:$true] %s33
      %39 = dma.hbm_to_vmem [thread:$0]  %s32, 256, %s34, [#allocation6], 128, 128, 8
    $region9: #{tpu_custom_call.1} parent=1 // pred_fallthru
      _
    // Predicated region
    $region10: #{tpu_custom_call.1} parent=1 // pred_check
      _
    $region11: #{tpu_custom_call.1} parent=1 // pred_check_branch
      %41 = sbr.rel (0) target = $region13
    $region12: #{tpu_custom_call.1} parent=1 // pred_region
      %43 = vsyncadd [#allocation6], 0
      %s44 = sshll.u32 %s2, 4
      %s45 = int_to_ptr.hbm [resolvable:$true] %s44
      %s46 = sshll.u32 [#allocation7], 4
      %s47 = int_to_ptr.vmem [resolvable:$true] %s46
      %52 = dma.hbm_to_vmem [thread:$0]  %s45, 1536, %s47, [#allocation6], 128, 128, 8
    $region13: #{tpu_custom_call.1} parent=1 // pred_fallthru
      _
    // Predicated region
    $region14: #{tpu_custom_call.1} parent=1 // pred_check
      _
    $region15: #{tpu_custom_call.1} parent=1 // pred_check_branch
      %54 = sbr.rel (0) target = $region17
    $region16: #{tpu_custom_call.1} parent=1 // pred_region
      %56 = vsyncadd [#allocation9], 0
      %s57 = sshll.u32 %s3, 4
      %s58 = int_to_ptr.hbm [resolvable:$true] %s57
      %s59 = sshll.u32 [#allocation8], 4
      %s60 = int_to_ptr.vmem [resolvable:$true] %s59
      %65 = dma.hbm_to_vmem [thread:$0]  %s58, 256, %s60, [#allocation9], 128, 128, 8
    $region17: #{tpu_custom_call.1} parent=1 // pred_fallthru
      _
    // Predicated region
    $region18: #{tpu_custom_call.1} parent=1 // pred_check
      _
    $region19: #{tpu_custom_call.1} parent=1 // pred_check_branch
      %67 = sbr.rel (0) target = $region21
    $region20: #{tpu_custom_call.1} parent=1 // pred_region
      %69 = vsyncadd [#allocation9], 0
      %s70 = sshll.u32 %s4, 4
      %s71 = int_to_ptr.hbm [resolvable:$true] %s70
      %s72 = sshll.u32 [#allocation10], 4
      %s73 = int_to_ptr.vmem [resolvable:$true] %s72
      %78 = dma.hbm_to_vmem [thread:$0]  %s71, 512, %s73, [#allocation9], 256, 256, 16
    $region21: #{tpu_custom_call.1} parent=1 // pred_fallthru
      _
    // Predicated region
    $region22: #{tpu_custom_call.1} parent=1 // pred_check
      _
    $region23: #{tpu_custom_call.1} parent=1 // pred_check_branch
      %80 = sbr.rel (0) target = $region25
    $region24: #{tpu_custom_call.1} parent=1 // pred_region
      %82 = dma.done [#allocation3], 512
    $region25: #{tpu_custom_call.1} parent=1 // pred_fallthru
      _
    // Predicated region
    $region26: #{tpu_custom_call.1} parent=1 // pred_check
      _
    $region27: #{tpu_custom_call.1} parent=1 // pred_check_branch
      %84 = sbr.rel (0) target = $region29
    $region28: #{tpu_custom_call.1} parent=1 // pred_region
      %86 = dma.done [#allocation6], 256
    $region29: #{tpu_custom_call.1} parent=1 // pred_fallthru
      _
    // Predicated region
    $region30: #{tpu_custom_call.1} parent=1 // pred_check
      _
    $region31: #{tpu_custom_call.1} parent=1 // pred_check_branch
      %88 = sbr.rel (0) target = $region33
    $region32: #{tpu_custom_call.1} parent=1 // pred_region
      %90 = dma.done [#allocation6], 1536
    $region33: #{tpu_custom_call.1} parent=1 // pred_fallthru
      _
    // Predicated region
    $region34: #{tpu_custom_call.1} parent=1 // pred_check
      _
    $region35: #{tpu_custom_call.1} parent=1 // pred_check_branch
      %92 = sbr.rel (0) target = $region37
    $region36: #{tpu_custom_call.1} parent=1 // pred_region
      %94 = dma.done [#allocation9], 256
    $region37: #{tpu_custom_call.1} parent=1 // pred_fallthru
      _
    // Predicated region
    $region38: #{tpu_custom_call.1} parent=1 // pred_check
      _
    $region39: #{tpu_custom_call.1} parent=1 // pred_check_branch
      %96 = sbr.rel (0) target = $region41
    $region40: #{tpu_custom_call.1} parent=1 // pred_region
      %98 = dma.done [#allocation9], 512
    $region41: #{tpu_custom_call.1} parent=1 // pred_fallthru
      _
    %v99 = vld [vmem:[#allocation2] sm:$0xff]
    %v100 = vld [vmem:[#allocation2 + $0x8] sm:$0xff]
    %v101 = vld [vmem:[#allocation2 + $0x10] sm:$0xff]
    %v102 = vld [vmem:[#allocation2 + $0x18] sm:$0xff]
    %v103 = vld [vmem:[#allocation5] sm:$0xff]
    %v104 = vld [vmem:[#allocation5 + $0x8] sm:$0xf]
    %v105 = vld [vmem:[#allocation7] sm:$0xff]
    %v106 = vld [vmem:[#allocation7 + $0x8] sm:$0xf]
    %v107 = vld [vmem:[#allocation7 + $0x10] sm:$0xff]
    %v108 = vld [vmem:[#allocation7 + $0x18] sm:$0xf]
    %v109 = vld [vmem:[#allocation7 + $0x20] sm:$0xff]
    %v110 = vld [vmem:[#allocation7 + $0x28] sm:$0xf]
    %v111 = vld [vmem:[#allocation7 + $0x30] sm:$0xff]
    %v112 = vld [vmem:[#allocation7 + $0x38] sm:$0xf]
    %v113 = vld [vmem:[#allocation7 + $0x40] sm:$0xff]
    %v114 = vld [vmem:[#allocation7 + $0x50] sm:$0xff]
    %v115 = vperm.slane %v103, 0
    %v116 = vlaneseq
    %v117 = vshrl.u32 %v116, 7
    %119 = vset.pattern.permute.xlu0 %v117
    %120 = vperm.xlu0 %119, %v115
    %v121 = vpop.permute.xlu0 %120
    %v122 = vlaneseq
    %v123 = vshrl.u32 %v122, 7
    %v124 = vadd.s32 %v123, 8
    %125 = vset.pattern.permute.xlu0 %v124
    %126 = vperm.xlu0 %125, %v115
    %v127 = vpop.permute.xlu0 %126
    %v128 = vlaneseq
    %v129 = vshrl.u32 %v128, 7
    %v130 = vadd.s32 %v129, 16
    %131 = vset.pattern.permute.xlu0 %v130
    %132 = vperm.xlu0 %131, %v115
    %v133 = vpop.permute.xlu0 %132
    %v134 = vlaneseq
    %v135 = vshrl.u32 %v134, 7
    %v136 = vadd.s32 %v135, 24
    %137 = vset.pattern.permute.xlu0 %v136
    %138 = vperm.xlu0 %137, %v115
    %v139 = vpop.permute.xlu0 %138
    %v140 = vperm.slane %v103, 1
    %v141 = vlaneseq
    %v142 = vshrl.u32 %v141, 7
    %144 = vset.pattern.permute.xlu0 %v142
    %145 = vperm.xlu0 %144, %v140
    %v146 = vpop.permute.xlu0 %145
    %v147 = vlaneseq
    %v148 = vshrl.u32 %v147, 7
    %v149 = vadd.s32 %v148, 8
    %150 = vset.pattern.permute.xlu0 %v149
    %151 = vperm.xlu0 %150, %v140
    %v152 = vpop.permute.xlu0 %151
    %v153 = vlaneseq
    %v154 = vshrl.u32 %v153, 7
    %v155 = vadd.s32 %v154, 16
    %156 = vset.pattern.permute.xlu0 %v155
    %157 = vperm.xlu0 %156, %v140
    %v158 = vpop.permute.xlu0 %157
    %v159 = vlaneseq
    %v160 = vshrl.u32 %v159, 7
    %v161 = vadd.s32 %v160, 24
    %162 = vset.pattern.permute.xlu0 %v161
    %163 = vperm.xlu0 %162, %v140
    %v164 = vpop.permute.xlu0 %163
    %v165 = vperm.slane %v103, 2
    %v166 = vlaneseq
    %v167 = vshrl.u32 %v166, 7
    %169 = vset.pattern.permute.xlu0 %v167
    %170 = vperm.xlu0 %169, %v165
    %v171 = vpop.permute.xlu0 %170
    %v172 = vlaneseq
    %v173 = vshrl.u32 %v172, 7
    %v174 = vadd.s32 %v173, 8
    %175 = vset.pattern.permute.xlu0 %v174
    %176 = vperm.xlu0 %175, %v165
    %v177 = vpop.permute.xlu0 %176
    %v178 = vlaneseq
    %v179 = vshrl.u32 %v178, 7
    %v180 = vadd.s32 %v179, 16
    %181 = vset.pattern.permute.xlu0 %v180
    %182 = vperm.xlu0 %181, %v165
    %v183 = vpop.permute.xlu0 %182
    %v184 = vlaneseq
    %v185 = vshrl.u32 %v184, 7
    %v186 = vadd.s32 %v185, 24
    %187 = vset.pattern.permute.xlu0 %v186
    %188 = vperm.xlu0 %187, %v165
    %v189 = vpop.permute.xlu0 %188
    %v190 = vperm.slane %v103, 3
    %v191 = vlaneseq
    %v192 = vshrl.u32 %v191, 7
    %194 = vset.pattern.permute.xlu0 %v192
    %195 = vperm.xlu0 %194, %v190
    %v196 = vpop.permute.xlu0 %195
    %v197 = vlaneseq
    %v198 = vshrl.u32 %v197, 7
    %v199 = vadd.s32 %v198, 8
    %200 = vset.pattern.permute.xlu0 %v199
    %201 = vperm.xlu0 %200, %v190
    %v202 = vpop.permute.xlu0 %201
    %v203 = vlaneseq
    %v204 = vshrl.u32 %v203, 7
    %v205 = vadd.s32 %v204, 16
    %206 = vset.pattern.permute.xlu0 %v205
    %207 = vperm.xlu0 %206, %v190
    %v208 = vpop.permute.xlu0 %207
    %v209 = vlaneseq
    %v210 = vshrl.u32 %v209, 7
    %v211 = vadd.s32 %v210, 24
    %212 = vset.pattern.permute.xlu0 %v211
    %213 = vperm.xlu0 %212, %v190
    %v214 = vpop.permute.xlu0 %213
    %v215 = vperm.slane %v103, 4
    %v216 = vlaneseq
    %v217 = vshrl.u32 %v216, 7
    %219 = vset.pattern.permute.xlu0 %v217
    %220 = vperm.xlu0 %219, %v215
    %v221 = vpop.permute.xlu0 %220
    %v222 = vlaneseq
    %v223 = vshrl.u32 %v222, 7
    %v224 = vadd.s32 %v223, 8
    %225 = vset.pattern.permute.xlu0 %v224
    %226 = vperm.xlu0 %225, %v215
    %v227 = vpop.permute.xlu0 %226
    %v228 = vlaneseq
    %v229 = vshrl.u32 %v228, 7
    %v230 = vadd.s32 %v229, 16
    %231 = vset.pattern.permute.xlu0 %v230
    %232 = vperm.xlu0 %231, %v215
    %v233 = vpop.permute.xlu0 %232
    %v234 = vlaneseq
    %v235 = vshrl.u32 %v234, 7
    %v236 = vadd.s32 %v235, 24
    %237 = vset.pattern.permute.xlu0 %v236
    %238 = vperm.xlu0 %237, %v215
    %v239 = vpop.permute.xlu0 %238
    %v240 = vperm.slane %v103, 5
    %v241 = vlaneseq
    %v242 = vshrl.u32 %v241, 7
    %244 = vset.pattern.permute.xlu0 %v242
    %245 = vperm.xlu0 %244, %v240
    %v246 = vpop.permute.xlu0 %245
    %v247 = vlaneseq
    %v248 = vshrl.u32 %v247, 7
    %v249 = vadd.s32 %v248, 8
    %250 = vset.pattern.permute.xlu0 %v249
    %251 = vperm.xlu0 %250, %v240
    %v252 = vpop.permute.xlu0 %251
    %v253 = vlaneseq
    %v254 = vshrl.u32 %v253, 7
    %v255 = vadd.s32 %v254, 16
    %256 = vset.pattern.permute.xlu0 %v255
    %257 = vperm.xlu0 %256, %v240
    %v258 = vpop.permute.xlu0 %257
    %v259 = vlaneseq
    %v260 = vshrl.u32 %v259, 7
    %v261 = vadd.s32 %v260, 24
    %262 = vset.pattern.permute.xlu0 %v261
    %263 = vperm.xlu0 %262, %v240
    %v264 = vpop.permute.xlu0 %263
    %v265 = vperm.slane %v103, 6
    %v266 = vlaneseq
    %v267 = vshrl.u32 %v266, 7
    %269 = vset.pattern.permute.xlu0 %v267
    %270 = vperm.xlu0 %269, %v265
    %v271 = vpop.permute.xlu0 %270
    %v272 = vlaneseq
    %v273 = vshrl.u32 %v272, 7
    %v274 = vadd.s32 %v273, 8
    %275 = vset.pattern.permute.xlu0 %v274
    %276 = vperm.xlu0 %275, %v265
    %v277 = vpop.permute.xlu0 %276
    %v278 = vlaneseq
    %v279 = vshrl.u32 %v278, 7
    %v280 = vadd.s32 %v279, 16
    %281 = vset.pattern.permute.xlu0 %v280
    %282 = vperm.xlu0 %281, %v265
    %v283 = vpop.permute.xlu0 %282
    %v284 = vlaneseq
    %v285 = vshrl.u32 %v284, 7
    %v286 = vadd.s32 %v285, 24
    %287 = vset.pattern.permute.xlu0 %v286
    %288 = vperm.xlu0 %287, %v265
    %v289 = vpop.permute.xlu0 %288
    %v290 = vperm.slane %v103, 7
    %v291 = vlaneseq
    %v292 = vshrl.u32 %v291, 7
    %294 = vset.pattern.permute.xlu0 %v292
    %295 = vperm.xlu0 %294, %v290
    %v296 = vpop.permute.xlu0 %295
    %v297 = vlaneseq
    %v298 = vshrl.u32 %v297, 7
    %v299 = vadd.s32 %v298, 8
    %300 = vset.pattern.permute.xlu0 %v299
    %301 = vperm.xlu0 %300, %v290
    %v302 = vpop.permute.xlu0 %301
    %v303 = vlaneseq
    %v304 = vshrl.u32 %v303, 7
    %v305 = vadd.s32 %v304, 16
    %306 = vset.pattern.permute.xlu0 %v305
    %307 = vperm.xlu0 %306, %v290
    %v308 = vpop.permute.xlu0 %307
    %v309 = vlaneseq
    %v310 = vshrl.u32 %v309, 7
    %v311 = vadd.s32 %v310, 24
    %312 = vset.pattern.permute.xlu0 %v311
    %313 = vperm.xlu0 %312, %v290
    %v314 = vpop.permute.xlu0 %313
    %v315 = vperm.slane %v104, 0
    %v316 = vlaneseq
    %v317 = vshrl.u32 %v316, 7
    %319 = vset.pattern.permute.xlu0 %v317
    %320 = vperm.xlu0 %319, %v315
    %v321 = vpop.permute.xlu0 %320
    %v322 = vlaneseq
    %v323 = vshrl.u32 %v322, 7
    %v324 = vadd.s32 %v323, 8
    %325 = vset.pattern.permute.xlu0 %v324
    %326 = vperm.xlu0 %325, %v315
    %v327 = vpop.permute.xlu0 %326
    %v328 = vlaneseq
    %v329 = vshrl.u32 %v328, 7
    %v330 = vadd.s32 %v329, 16
    %331 = vset.pattern.permute.xlu0 %v330
    %332 = vperm.xlu0 %331, %v315
    %v333 = vpop.permute.xlu0 %332
    %v334 = vlaneseq
    %v335 = vshrl.u32 %v334, 7
    %v336 = vadd.s32 %v335, 24
    %337 = vset.pattern.permute.xlu0 %v336
    %338 = vperm.xlu0 %337, %v315
    %v339 = vpop.permute.xlu0 %338
    %v340 = vperm.slane %v104, 1
    %v341 = vlaneseq
    %v342 = vshrl.u32 %v341, 7
    %344 = vset.pattern.permute.xlu0 %v342
    %345 = vperm.xlu0 %344, %v340
    %v346 = vpop.permute.xlu0 %345
    %v347 = vlaneseq
    %v348 = vshrl.u32 %v347, 7
    %v349 = vadd.s32 %v348, 8
    %350 = vset.pattern.permute.xlu0 %v349
    %351 = vperm.xlu0 %350, %v340
    %v352 = vpop.permute.xlu0 %351
    %v353 = vlaneseq
    %v354 = vshrl.u32 %v353, 7
    %v355 = vadd.s32 %v354, 16
    %356 = vset.pattern.permute.xlu0 %v355
    %357 = vperm.xlu0 %356, %v340
    %v358 = vpop.permute.xlu0 %357
    %v359 = vlaneseq
    %v360 = vshrl.u32 %v359, 7
    %v361 = vadd.s32 %v360, 24
    %362 = vset.pattern.permute.xlu0 %v361
    %363 = vperm.xlu0 %362, %v340
    %v364 = vpop.permute.xlu0 %363
    %v365 = vperm.slane %v104, 2
    %v366 = vlaneseq
    %v367 = vshrl.u32 %v366, 7
    %369 = vset.pattern.permute.xlu0 %v367
    %370 = vperm.xlu0 %369, %v365
    %v371 = vpop.permute.xlu0 %370
    %v372 = vlaneseq
    %v373 = vshrl.u32 %v372, 7
    %v374 = vadd.s32 %v373, 8
    %375 = vset.pattern.permute.xlu0 %v374
    %376 = vperm.xlu0 %375, %v365
    %v377 = vpop.permute.xlu0 %376
    %v378 = vlaneseq
    %v379 = vshrl.u32 %v378, 7
    %v380 = vadd.s32 %v379, 16
    %381 = vset.pattern.permute.xlu0 %v380
    %382 = vperm.xlu0 %381, %v365
    %v383 = vpop.permute.xlu0 %382
    %v384 = vlaneseq
    %v385 = vshrl.u32 %v384, 7
    %v386 = vadd.s32 %v385, 24
    %387 = vset.pattern.permute.xlu0 %v386
    %388 = vperm.xlu0 %387, %v365
    %v389 = vpop.permute.xlu0 %388
    %v390 = vperm.slane %v104, 3
    %v391 = vlaneseq
    %v392 = vshrl.u32 %v391, 7
    %394 = vset.pattern.permute.xlu0 %v392
    %395 = vperm.xlu0 %394, %v390
    %v396 = vpop.permute.xlu0 %395
    %v397 = vlaneseq
    %v398 = vshrl.u32 %v397, 7
    %v399 = vadd.s32 %v398, 8
    %400 = vset.pattern.permute.xlu0 %v399
    %401 = vperm.xlu0 %400, %v390
    %v402 = vpop.permute.xlu0 %401
    %v403 = vlaneseq
    %v404 = vshrl.u32 %v403, 7
    %v405 = vadd.s32 %v404, 16
    %406 = vset.pattern.permute.xlu0 %v405
    %407 = vperm.xlu0 %406, %v390
    %v408 = vpop.permute.xlu0 %407
    %v409 = vlaneseq
    %v410 = vshrl.u32 %v409, 7
    %v411 = vadd.s32 %v410, 24
    %412 = vset.pattern.permute.xlu0 %v411
    %413 = vperm.xlu0 %412, %v390
    %v414 = vpop.permute.xlu0 %413
    %v415 = vsub.f32 0.0, %v99
    %v416 = vsub.f32 0.0, %v100
    %v417 = vsub.f32 0.0, %v101
    %v418 = vsub.f32 0.0, %v102
    %v419 = vmul.f32 %v415, 1.442695
    %v420 = vpow.pop %v419
    %v421 = vmul.f32 %v416, 1.442695
    %v422 = vpow.pop %v421
    %v423 = vmul.f32 %v417, 1.442695
    %v424 = vpow.pop %v423
    %v425 = vmul.f32 %v418, 1.442695
    %v426 = vpow.pop %v425
    %v427 = vadd.f32 %v420, 1.0
    %v428 = vadd.f32 %v422, 1.0
    %v429 = vadd.f32 %v424, 1.0
    %v430 = vadd.f32 %v426, 1.0
    %v431 = vrcp.pop %v427
    %v432 = vmul.f32 %v427, %v431
    %v433 = vsub.f32 1.0, %v432
    %v434 = vmul.f32 %v431, %v433
    %v435 = vadd.f32 %v431, %v434
    %vm436 = vweird.f32 %v427
    %vm437 = vweird.f32 %v431
    %vm438 = vmor %vm436, %vm437
    %v439 = vsel %vm438, %v431, %v435
    %v440 = vand.u32 2147483647, %v427
    %vm441 = vcmp.eq.f32.partialorder %v440, 8.507059e+37
    %v442 = vand.u32 %v427, 2147483648
    %v443 = vor.u32 1.1754944e-38, %v442
    %v444 = vsel %vm441, %v443, %v439
    %v445 = vrcp.pop %v428
    %v446 = vmul.f32 %v428, %v445
    %v447 = vsub.f32 1.0, %v446
    %v448 = vmul.f32 %v445, %v447
    %v449 = vadd.f32 %v445, %v448
    %vm450 = vweird.f32 %v428
    %vm451 = vweird.f32 %v445
    %vm452 = vmor %vm450, %vm451
    %v453 = vsel %vm452, %v445, %v449
    %v454 = vand.u32 2147483647, %v428
    %vm455 = vcmp.eq.f32.partialorder %v454, 8.507059e+37
    %v456 = vand.u32 %v428, 2147483648
    %v457 = vor.u32 1.1754944e-38, %v456
    %v458 = vsel %vm455, %v457, %v453
    %v459 = vrcp.pop %v429
    %v460 = vmul.f32 %v429, %v459
    %v461 = vsub.f32 1.0, %v460
    %v462 = vmul.f32 %v459, %v461
    %v463 = vadd.f32 %v459, %v462
    %vm464 = vweird.f32 %v429
    %vm465 = vweird.f32 %v459
    %vm466 = vmor %vm464, %vm465
    %v467 = vsel %vm466, %v459, %v463
    %v468 = vand.u32 2147483647, %v429
    %vm469 = vcmp.eq.f32.partialorder %v468, 8.507059e+37
    %v470 = vand.u32 %v429, 2147483648
    %v471 = vor.u32 1.1754944e-38, %v470
    %v472 = vsel %vm469, %v471, %v467
    %v473 = vrcp.pop %v430
    %v474 = vmul.f32 %v430, %v473
    %v475 = vsub.f32 1.0, %v474
    %v476 = vmul.f32 %v473, %v475
    %v477 = vadd.f32 %v473, %v476
    %vm478 = vweird.f32 %v430
    %vm479 = vweird.f32 %v473
    %vm480 = vmor %vm478, %vm479
    %v481 = vsel %vm480, %v473, %v477
    %v482 = vand.u32 2147483647, %v430
    %vm483 = vcmp.eq.f32.partialorder %v482, 8.507059e+37
    %v484 = vand.u32 %v430, 2147483648
    %v485 = vor.u32 1.1754944e-38, %v484
    %v486 = vsel %vm483, %v485, %v481
    %v487 = vmul.f32 %v99, %v444
    %v488 = vmul.f32 %v100, %v458
    %v489 = vmul.f32 %v101, %v472
    %v490 = vmul.f32 %v102, %v486
    %v491 = vld [vmem:[#allocation8] sm:$0xff]
    %v492 = vld [vmem:[#allocation8 + $0x8] sm:$0xff]
    %vm493 = vcmp.ge.f32.partialorder %v99, %v121
    %vm494 = vcmp.ge.f32.partialorder %v100, %v127
    %vm495 = vcmp.ge.f32.partialorder %v101, %v133
    %vm496 = vcmp.ge.f32.partialorder %v102, %v139
    %vm497 = vcmp.ge.f32.partialorder %v99, %v146
    %vm498 = vcmp.ge.f32.partialorder %v100, %v152
    %vm499 = vcmp.ge.f32.partialorder %v101, %v158
    %vm500 = vcmp.ge.f32.partialorder %v102, %v164
    %vm501 = vcmp.ge.f32.partialorder %v99, %v171
    %vm502 = vcmp.ge.f32.partialorder %v100, %v177
    %vm503 = vcmp.ge.f32.partialorder %v101, %v183
    %vm504 = vcmp.ge.f32.partialorder %v102, %v189
    %vm505 = vcmp.ge.f32.partialorder %v99, %v196
    %vm506 = vcmp.ge.f32.partialorder %v100, %v202
    %vm507 = vcmp.ge.f32.partialorder %v101, %v208
    %vm508 = vcmp.ge.f32.partialorder %v102, %v214
    %vm509 = vcmp.ge.f32.partialorder %v99, %v221
    %vm510 = vcmp.ge.f32.partialorder %v100, %v227
    %vm511 = vcmp.ge.f32.partialorder %v101, %v233
    %vm512 = vcmp.ge.f32.partialorder %v102, %v239
    %vm513 = vcmp.ge.f32.partialorder %v99, %v246
    %vm514 = vcmp.ge.f32.partialorder %v100, %v252
    %vm515 = vcmp.ge.f32.partialorder %v101, %v258
    %vm516 = vcmp.ge.f32.partialorder %v102, %v264
    %vm517 = vcmp.ge.f32.partialorder %v99, %v271
    %vm518 = vcmp.ge.f32.partialorder %v100, %v277
    %vm519 = vcmp.ge.f32.partialorder %v101, %v283
    %vm520 = vcmp.ge.f32.partialorder %v102, %v289
    %vm521 = vcmp.ge.f32.partialorder %v99, %v296
    %vm522 = vcmp.ge.f32.partialorder %v100, %v302
    %vm523 = vcmp.ge.f32.partialorder %v101, %v308
    %vm524 = vcmp.ge.f32.partialorder %v102, %v314
    %vm525 = vcmp.ge.f32.partialorder %v99, %v321
    %vm526 = vcmp.ge.f32.partialorder %v100, %v327
    %vm527 = vcmp.ge.f32.partialorder %v101, %v333
    %vm528 = vcmp.ge.f32.partialorder %v102, %v339
    %vm529 = vcmp.ge.f32.partialorder %v99, %v346
    %vm530 = vcmp.ge.f32.partialorder %v100, %v352
    %vm531 = vcmp.ge.f32.partialorder %v101, %v358
    %vm532 = vcmp.ge.f32.partialorder %v102, %v364
    %vm533 = vcmp.ge.f32.partialorder %v99, %v371
    %vm534 = vcmp.ge.f32.partialorder %v100, %v377
    %vm535 = vcmp.ge.f32.partialorder %v101, %v383
    %vm536 = vcmp.ge.f32.partialorder %v102, %v389
    %vm537 = vcmp.lt.f32.partialorder %v99, %v146
    %vm538 = vcmp.lt.f32.partialorder %v100, %v152
    %vm539 = vcmp.lt.f32.partialorder %v101, %v158
    %vm540 = vcmp.lt.f32.partialorder %v102, %v164
    %vm541 = vcmp.lt.f32.partialorder %v99, %v171
    %vm542 = vcmp.lt.f32.partialorder %v100, %v177
    %vm543 = vcmp.lt.f32.partialorder %v101, %v183
    %vm544 = vcmp.lt.f32.partialorder %v102, %v189
    %vm545 = vcmp.lt.f32.partialorder %v99, %v196
    %vm546 = vcmp.lt.f32.partialorder %v100, %v202
    %vm547 = vcmp.lt.f32.partialorder %v101, %v208
    %vm548 = vcmp.lt.f32.partialorder %v102, %v214
    %vm549 = vcmp.lt.f32.partialorder %v99, %v221
    %vm550 = vcmp.lt.f32.partialorder %v100, %v227
    %vm551 = vcmp.lt.f32.partialorder %v101, %v233
    %vm552 = vcmp.lt.f32.partialorder %v102, %v239
    %vm553 = vcmp.lt.f32.partialorder %v99, %v246
    %vm554 = vcmp.lt.f32.partialorder %v100, %v252
    %vm555 = vcmp.lt.f32.partialorder %v101, %v258
    %vm556 = vcmp.lt.f32.partialorder %v102, %v264
    %vm557 = vcmp.lt.f32.partialorder %v99, %v271
    %vm558 = vcmp.lt.f32.partialorder %v100, %v277
    %vm559 = vcmp.lt.f32.partialorder %v101, %v283
    %vm560 = vcmp.lt.f32.partialorder %v102, %v289
    %vm561 = vcmp.lt.f32.partialorder %v99, %v296
    %vm562 = vcmp.lt.f32.partialorder %v100, %v302
    %vm563 = vcmp.lt.f32.partialorder %v101, %v308
    %vm564 = vcmp.lt.f32.partialorder %v102, %v314
    %vm565 = vcmp.lt.f32.partialorder %v99, %v321
    %vm566 = vcmp.lt.f32.partialorder %v100, %v327
    %vm567 = vcmp.lt.f32.partialorder %v101, %v333
    %vm568 = vcmp.lt.f32.partialorder %v102, %v339
    %vm569 = vcmp.lt.f32.partialorder %v99, %v346
    %vm570 = vcmp.lt.f32.partialorder %v100, %v352
    %vm571 = vcmp.lt.f32.partialorder %v101, %v358
    %vm572 = vcmp.lt.f32.partialorder %v102, %v364
    %vm573 = vcmp.lt.f32.partialorder %v99, %v371
    %vm574 = vcmp.lt.f32.partialorder %v100, %v377
    %vm575 = vcmp.lt.f32.partialorder %v101, %v383
    %vm576 = vcmp.lt.f32.partialorder %v102, %v389
    %vm577 = vcmp.lt.f32.partialorder %v99, %v396
    %vm578 = vcmp.lt.f32.partialorder %v100, %v402
    %vm579 = vcmp.lt.f32.partialorder %v101, %v408
    %vm580 = vcmp.lt.f32.partialorder %v102, %v414
    %vm581 = vmand %vm493, %vm537
    %vm582 = vmand %vm494, %vm538
    %vm583 = vmand %vm495, %vm539
    %vm584 = vmand %vm496, %vm540
    %vm585 = vmand %vm497, %vm541
    %vm586 = vmand %vm498, %vm542
    %vm587 = vmand %vm499, %vm543
    %vm588 = vmand %vm500, %vm544
    %vm589 = vmand %vm501, %vm545
    %vm590 = vmand %vm502, %vm546
    %vm591 = vmand %vm503, %vm547
    %vm592 = vmand %vm504, %vm548
    %vm593 = vmand %vm505, %vm549
    %vm594 = vmand %vm506, %vm550
    %vm595 = vmand %vm507, %vm551
    %vm596 = vmand %vm508, %vm552
    %vm597 = vmand %vm509, %vm553
    %vm598 = vmand %vm510, %vm554
    %vm599 = vmand %vm511, %vm555
    %vm600 = vmand %vm512, %vm556
    %vm601 = vmand %vm513, %vm557
    %vm602 = vmand %vm514, %vm558
    %vm603 = vmand %vm515, %vm559
    %vm604 = vmand %vm516, %vm560
    %vm605 = vmand %vm517, %vm561
    %vm606 = vmand %vm518, %vm562
    %vm607 = vmand %vm519, %vm563
    %vm608 = vmand %vm520, %vm564
    %vm609 = vmand %vm521, %vm565
    %vm610 = vmand %vm522, %vm566
    %vm611 = vmand %vm523, %vm567
    %vm612 = vmand %vm524, %vm568
    %vm613 = vmand %vm525, %vm569
    %vm614 = vmand %vm526, %vm570
    %vm615 = vmand %vm527, %vm571
    %vm616 = vmand %vm528, %vm572
    %vm617 = vmand %vm529, %vm573
    %vm618 = vmand %vm530, %vm574
    %vm619 = vmand %vm531, %vm575
    %vm620 = vmand %vm532, %vm576
    %vm621 = vmand %vm533, %vm577
    %vm622 = vmand %vm534, %vm578
    %vm623 = vmand %vm535, %vm579
    %vm624 = vmand %vm536, %vm580
    %v625 = vsel %vm581, 1, 0
    %v626 = vsel %vm582, 1, 0
    %v627 = vsel %vm583, 1, 0
    %v628 = vsel %vm584, 1, 0
    %v629 = vsel %vm585, 1, 0
    %v630 = vsel %vm586, 1, 0
    %v631 = vsel %vm587, 1, 0
    %v632 = vsel %vm588, 1, 0
    %v633 = vsel %vm589, 1, 0
    %v634 = vsel %vm590, 1, 0
    %v635 = vsel %vm591, 1, 0
    %v636 = vsel %vm592, 1, 0
    %v637 = vsel %vm593, 1, 0
    %v638 = vsel %vm594, 1, 0
    %v639 = vsel %vm595, 1, 0
    %v640 = vsel %vm596, 1, 0
    %v641 = vsel %vm597, 1, 0
    %v642 = vsel %vm598, 1, 0
    %v643 = vsel %vm599, 1, 0
    %v644 = vsel %vm600, 1, 0
    %v645 = vsel %vm601, 1, 0
    %v646 = vsel %vm602, 1, 0
    %v647 = vsel %vm603, 1, 0
    %v648 = vsel %vm604, 1, 0
    %v649 = vsel %vm605, 1, 0
    %v650 = vsel %vm606, 1, 0
    %v651 = vsel %vm607, 1, 0
    %v652 = vsel %vm608, 1, 0
    %v653 = vsel %vm609, 1, 0
    %v654 = vsel %vm610, 1, 0
    %v655 = vsel %vm611, 1, 0
    %v656 = vsel %vm612, 1, 0
    %v657 = vsel %vm613, 1, 0
    %v658 = vsel %vm614, 1, 0
    %v659 = vsel %vm615, 1, 0
    %v660 = vsel %vm616, 1, 0
    %v661 = vsel %vm617, 1, 0
    %v662 = vsel %vm618, 1, 0
    %v663 = vsel %vm619, 1, 0
    %v664 = vsel %vm620, 1, 0
    %v665 = vsel %vm621, 1, 0
    %v666 = vsel %vm622, 1, 0
    %v667 = vsel %vm623, 1, 0
    %v668 = vsel %vm624, 1, 0
    %v669 = vcvt.s32.f32 %v625
    %v670 = vcvt.s32.f32 %v626
    %v671 = vcvt.s32.f32 %v627
    %v672 = vcvt.s32.f32 %v628
    %v673 = vcvt.s32.f32 %v629
    %v674 = vcvt.s32.f32 %v630
    %v675 = vcvt.s32.f32 %v631
    %v676 = vcvt.s32.f32 %v632
    %v677 = vcvt.s32.f32 %v633
    %v678 = vcvt.s32.f32 %v634
    %v679 = vcvt.s32.f32 %v635
    %v680 = vcvt.s32.f32 %v636
    %v681 = vcvt.s32.f32 %v637
    %v682 = vcvt.s32.f32 %v638
    %v683 = vcvt.s32.f32 %v639
    %v684 = vcvt.s32.f32 %v640
    %v685 = vcvt.s32.f32 %v641
    %v686 = vcvt.s32.f32 %v642
    %v687 = vcvt.s32.f32 %v643
    %v688 = vcvt.s32.f32 %v644
    %v689 = vcvt.s32.f32 %v645
    %v690 = vcvt.s32.f32 %v646
    %v691 = vcvt.s32.f32 %v647
    %v692 = vcvt.s32.f32 %v648
    %v693 = vcvt.s32.f32 %v649
    %v694 = vcvt.s32.f32 %v650
    %v695 = vcvt.s32.f32 %v651
    %v696 = vcvt.s32.f32 %v652
    %v697 = vcvt.s32.f32 %v653
    %v698 = vcvt.s32.f32 %v654
    %v699 = vcvt.s32.f32 %v655
    %v700 = vcvt.s32.f32 %v656
    %v701 = vcvt.s32.f32 %v657
    %v702 = vcvt.s32.f32 %v658
    %v703 = vcvt.s32.f32 %v659
    %v704 = vcvt.s32.f32 %v660
    %v705 = vcvt.s32.f32 %v661
    %v706 = vcvt.s32.f32 %v662
    %v707 = vcvt.s32.f32 %v663
    %v708 = vcvt.s32.f32 %v664
    %v709 = vcvt.s32.f32 %v665
    %v710 = vcvt.s32.f32 %v666
    %v711 = vcvt.s32.f32 %v667
    %v712 = vcvt.s32.f32 %v668
    %v713 = vperm.slane %v105, 0
    %v714 = vlaneseq
    %v715 = vshrl.u32 %v714, 7
    %717 = vset.pattern.permute.xlu0 %v715
    %718 = vperm.xlu0 %717, %v713
    %v719 = vpop.permute.xlu0 %718
    %v720 = vlaneseq
    %v721 = vshrl.u32 %v720, 7
    %v722 = vadd.s32 %v721, 8
    %723 = vset.pattern.permute.xlu0 %v722
    %724 = vperm.xlu0 %723, %v713
    %v725 = vpop.permute.xlu0 %724
    %v726 = vlaneseq
    %v727 = vshrl.u32 %v726, 7
    %v728 = vadd.s32 %v727, 16
    %729 = vset.pattern.permute.xlu0 %v728
    %730 = vperm.xlu0 %729, %v713
    %v731 = vpop.permute.xlu0 %730
    %v732 = vlaneseq
    %v733 = vshrl.u32 %v732, 7
    %v734 = vadd.s32 %v733, 24
    %735 = vset.pattern.permute.xlu0 %v734
    %736 = vperm.xlu0 %735, %v713
    %v737 = vpop.permute.xlu0 %736
    %v738 = vperm.slane %v105, 1
    %v739 = vlaneseq
    %v740 = vshrl.u32 %v739, 7
    %742 = vset.pattern.permute.xlu0 %v740
    %743 = vperm.xlu0 %742, %v738
    %v744 = vpop.permute.xlu0 %743
    %v745 = vlaneseq
    %v746 = vshrl.u32 %v745, 7
    %v747 = vadd.s32 %v746, 8
    %748 = vset.pattern.permute.xlu0 %v747
    %749 = vperm.xlu0 %748, %v738
    %v750 = vpop.permute.xlu0 %749
    %v751 = vlaneseq
    %v752 = vshrl.u32 %v751, 7
    %v753 = vadd.s32 %v752, 16
    %754 = vset.pattern.permute.xlu0 %v753
    %755 = vperm.xlu0 %754, %v738
    %v756 = vpop.permute.xlu0 %755
    %v757 = vlaneseq
    %v758 = vshrl.u32 %v757, 7
    %v759 = vadd.s32 %v758, 24
    %760 = vset.pattern.permute.xlu0 %v759
    %761 = vperm.xlu0 %760, %v738
    %v762 = vpop.permute.xlu0 %761
    %v763 = vperm.slane %v105, 2
    %v764 = vlaneseq
    %v765 = vshrl.u32 %v764, 7
    %767 = vset.pattern.permute.xlu0 %v765
    %768 = vperm.xlu0 %767, %v763
    %v769 = vpop.permute.xlu0 %768
    %v770 = vlaneseq
    %v771 = vshrl.u32 %v770, 7
    %v772 = vadd.s32 %v771, 8
    %773 = vset.pattern.permute.xlu0 %v772
    %774 = vperm.xlu0 %773, %v763
    %v775 = vpop.permute.xlu0 %774
    %v776 = vlaneseq
    %v777 = vshrl.u32 %v776, 7
    %v778 = vadd.s32 %v777, 16
    %779 = vset.pattern.permute.xlu0 %v778
    %780 = vperm.xlu0 %779, %v763
    %v781 = vpop.permute.xlu0 %780
    %v782 = vlaneseq
    %v783 = vshrl.u32 %v782, 7
    %v784 = vadd.s32 %v783, 24
    %785 = vset.pattern.permute.xlu0 %v784
    %786 = vperm.xlu0 %785, %v763
    %v787 = vpop.permute.xlu0 %786
    %v788 = vperm.slane %v105, 3
    %v789 = vlaneseq
    %v790 = vshrl.u32 %v789, 7
    %792 = vset.pattern.permute.xlu0 %v790
    %793 = vperm.xlu0 %792, %v788
    %v794 = vpop.permute.xlu0 %793
    %v795 = vlaneseq
    %v796 = vshrl.u32 %v795, 7
    %v797 = vadd.s32 %v796, 8
    %798 = vset.pattern.permute.xlu0 %v797
    %799 = vperm.xlu0 %798, %v788
    %v800 = vpop.permute.xlu0 %799
    %v801 = vlaneseq
    %v802 = vshrl.u32 %v801, 7
    %v803 = vadd.s32 %v802, 16
    %804 = vset.pattern.permute.xlu0 %v803
    %805 = vperm.xlu0 %804, %v788
    %v806 = vpop.permute.xlu0 %805
    %v807 = vlaneseq
    %v808 = vshrl.u32 %v807, 7
    %v809 = vadd.s32 %v808, 24
    %810 = vset.pattern.permute.xlu0 %v809
    %811 = vperm.xlu0 %810, %v788
    %v812 = vpop.permute.xlu0 %811
    %v813 = vperm.slane %v105, 4
    %v814 = vlaneseq
    %v815 = vshrl.u32 %v814, 7
    %817 = vset.pattern.permute.xlu0 %v815
    %818 = vperm.xlu0 %817, %v813
    %v819 = vpop.permute.xlu0 %818
    %v820 = vlaneseq
    %v821 = vshrl.u32 %v820, 7
    %v822 = vadd.s32 %v821, 8
    %823 = vset.pattern.permute.xlu0 %v822
    %824 = vperm.xlu0 %823, %v813
    %v825 = vpop.permute.xlu0 %824
    %v826 = vlaneseq
    %v827 = vshrl.u32 %v826, 7
    %v828 = vadd.s32 %v827, 16
    %829 = vset.pattern.permute.xlu0 %v828
    %830 = vperm.xlu0 %829, %v813
    %v831 = vpop.permute.xlu0 %830
    %v832 = vlaneseq
    %v833 = vshrl.u32 %v832, 7
    %v834 = vadd.s32 %v833, 24
    %835 = vset.pattern.permute.xlu0 %v834
    %836 = vperm.xlu0 %835, %v813
    %v837 = vpop.permute.xlu0 %836
    %v838 = vperm.slane %v105, 5
    %v839 = vlaneseq
    %v840 = vshrl.u32 %v839, 7
    %842 = vset.pattern.permute.xlu0 %v840
    %843 = vperm.xlu0 %842, %v838
    %v844 = vpop.permute.xlu0 %843
    %v845 = vlaneseq
    %v846 = vshrl.u32 %v845, 7
    %v847 = vadd.s32 %v846, 8
    %848 = vset.pattern.permute.xlu0 %v847
    %849 = vperm.xlu0 %848, %v838
    %v850 = vpop.permute.xlu0 %849
    %v851 = vlaneseq
    %v852 = vshrl.u32 %v851, 7
    %v853 = vadd.s32 %v852, 16
    %854 = vset.pattern.permute.xlu0 %v853
    %855 = vperm.xlu0 %854, %v838
    %v856 = vpop.permute.xlu0 %855
    %v857 = vlaneseq
    %v858 = vshrl.u32 %v857, 7
    %v859 = vadd.s32 %v858, 24
    %860 = vset.pattern.permute.xlu0 %v859
    %861 = vperm.xlu0 %860, %v838
    %v862 = vpop.permute.xlu0 %861
    %v863 = vperm.slane %v105, 6
    %v864 = vlaneseq
    %v865 = vshrl.u32 %v864, 7
    %867 = vset.pattern.permute.xlu0 %v865
    %868 = vperm.xlu0 %867, %v863
    %v869 = vpop.permute.xlu0 %868
    %v870 = vlaneseq
    %v871 = vshrl.u32 %v870, 7
    %v872 = vadd.s32 %v871, 8
    %873 = vset.pattern.permute.xlu0 %v872
    %874 = vperm.xlu0 %873, %v863
    %v875 = vpop.permute.xlu0 %874
    %v876 = vlaneseq
    %v877 = vshrl.u32 %v876, 7
    %v878 = vadd.s32 %v877, 16
    %879 = vset.pattern.permute.xlu0 %v878
    %880 = vperm.xlu0 %879, %v863
    %v881 = vpop.permute.xlu0 %880
    %v882 = vlaneseq
    %v883 = vshrl.u32 %v882, 7
    %v884 = vadd.s32 %v883, 24
    %885 = vset.pattern.permute.xlu0 %v884
    %886 = vperm.xlu0 %885, %v863
    %v887 = vpop.permute.xlu0 %886
    %v888 = vperm.slane %v105, 7
    %v889 = vlaneseq
    %v890 = vshrl.u32 %v889, 7
    %892 = vset.pattern.permute.xlu0 %v890
    %893 = vperm.xlu0 %892, %v888
    %v894 = vpop.permute.xlu0 %893
    %v895 = vlaneseq
    %v896 = vshrl.u32 %v895, 7
    %v897 = vadd.s32 %v896, 8
    %898 = vset.pattern.permute.xlu0 %v897
    %899 = vperm.xlu0 %898, %v888
    %v900 = vpop.permute.xlu0 %899
    %v901 = vlaneseq
    %v902 = vshrl.u32 %v901, 7
    %v903 = vadd.s32 %v902, 16
    %904 = vset.pattern.permute.xlu0 %v903
    %905 = vperm.xlu0 %904, %v888
    %v906 = vpop.permute.xlu0 %905
    %v907 = vlaneseq
    %v908 = vshrl.u32 %v907, 7
    %v909 = vadd.s32 %v908, 24
    %910 = vset.pattern.permute.xlu0 %v909
    %911 = vperm.xlu0 %910, %v888
    %v912 = vpop.permute.xlu0 %911
    %v913 = vperm.slane %v106, 0
    %v914 = vlaneseq
    %v915 = vshrl.u32 %v914, 7
    %917 = vset.pattern.permute.xlu0 %v915
    %918 = vperm.xlu0 %917, %v913
    %v919 = vpop.permute.xlu0 %918
    %v920 = vlaneseq
    %v921 = vshrl.u32 %v920, 7
    %v922 = vadd.s32 %v921, 8
    %923 = vset.pattern.permute.xlu0 %v922
    %924 = vperm.xlu0 %923, %v913
    %v925 = vpop.permute.xlu0 %924
    %v926 = vlaneseq
    %v927 = vshrl.u32 %v926, 7
    %v928 = vadd.s32 %v927, 16
    %929 = vset.pattern.permute.xlu0 %v928
    %930 = vperm.xlu0 %929, %v913
    %v931 = vpop.permute.xlu0 %930
    %v932 = vlaneseq
    %v933 = vshrl.u32 %v932, 7
    %v934 = vadd.s32 %v933, 24
    %935 = vset.pattern.permute.xlu0 %v934
    %936 = vperm.xlu0 %935, %v913
    %v937 = vpop.permute.xlu0 %936
    %v938 = vperm.slane %v106, 1
    %v939 = vlaneseq
    %v940 = vshrl.u32 %v939, 7
    %942 = vset.pattern.permute.xlu0 %v940
    %943 = vperm.xlu0 %942, %v938
    %v944 = vpop.permute.xlu0 %943
    %v945 = vlaneseq
    %v946 = vshrl.u32 %v945, 7
    %v947 = vadd.s32 %v946, 8
    %948 = vset.pattern.permute.xlu0 %v947
    %949 = vperm.xlu0 %948, %v938
    %v950 = vpop.permute.xlu0 %949
    %v951 = vlaneseq
    %v952 = vshrl.u32 %v951, 7
    %v953 = vadd.s32 %v952, 16
    %954 = vset.pattern.permute.xlu0 %v953
    %955 = vperm.xlu0 %954, %v938
    %v956 = vpop.permute.xlu0 %955
    %v957 = vlaneseq
    %v958 = vshrl.u32 %v957, 7
    %v959 = vadd.s32 %v958, 24
    %960 = vset.pattern.permute.xlu0 %v959
    %961 = vperm.xlu0 %960, %v938
    %v962 = vpop.permute.xlu0 %961
    %v963 = vperm.slane %v107, 0
    %v964 = vlaneseq
    %v965 = vshrl.u32 %v964, 7
    %967 = vset.pattern.permute.xlu0 %v965
    %968 = vperm.xlu0 %967, %v963
    %v969 = vpop.permute.xlu0 %968
    %v970 = vlaneseq
    %v971 = vshrl.u32 %v970, 7
    %v972 = vadd.s32 %v971, 8
    %973 = vset.pattern.permute.xlu0 %v972
    %974 = vperm.xlu0 %973, %v963
    %v975 = vpop.permute.xlu0 %974
    %v976 = vlaneseq
    %v977 = vshrl.u32 %v976, 7
    %v978 = vadd.s32 %v977, 16
    %979 = vset.pattern.permute.xlu0 %v978
    %980 = vperm.xlu0 %979, %v963
    %v981 = vpop.permute.xlu0 %980
    %v982 = vlaneseq
    %v983 = vshrl.u32 %v982, 7
    %v984 = vadd.s32 %v983, 24
    %985 = vset.pattern.permute.xlu0 %v984
    %986 = vperm.xlu0 %985, %v963
    %v987 = vpop.permute.xlu0 %986
    %v988 = vperm.slane %v107, 1
    %v989 = vlaneseq
    %v990 = vshrl.u32 %v989, 7
    %992 = vset.pattern.permute.xlu0 %v990
    %993 = vperm.xlu0 %992, %v988
    %v994 = vpop.permute.xlu0 %993
    %v995 = vlaneseq
    %v996 = vshrl.u32 %v995, 7
    %v997 = vadd.s32 %v996, 8
    %998 = vset.pattern.permute.xlu0 %v997
    %999 = vperm.xlu0 %998, %v988
    %v1000 = vpop.permute.xlu0 %999
    %v1001 = vlaneseq
    %v1002 = vshrl.u32 %v1001, 7
    %v1003 = vadd.s32 %v1002, 16
    %1004 = vset.pattern.permute.xlu0 %v1003
    %1005 = vperm.xlu0 %1004, %v988
    %v1006 = vpop.permute.xlu0 %1005
    %v1007 = vlaneseq
    %v1008 = vshrl.u32 %v1007, 7
    %v1009 = vadd.s32 %v1008, 24
    %1010 = vset.pattern.permute.xlu0 %v1009
    %1011 = vperm.xlu0 %1010, %v988
    %v1012 = vpop.permute.xlu0 %1011
    %v1013 = vperm.slane %v107, 2
    %v1014 = vlaneseq
    %v1015 = vshrl.u32 %v1014, 7
    %1017 = vset.pattern.permute.xlu0 %v1015
    %1018 = vperm.xlu0 %1017, %v1013
    %v1019 = vpop.permute.xlu0 %1018
    %v1020 = vlaneseq
    %v1021 = vshrl.u32 %v1020, 7
    %v1022 = vadd.s32 %v1021, 8
    %1023 = vset.pattern.permute.xlu0 %v1022
    %1024 = vperm.xlu0 %1023, %v1013
    %v1025 = vpop.permute.xlu0 %1024
    %v1026 = vlaneseq
    %v1027 = vshrl.u32 %v1026, 7
    %v1028 = vadd.s32 %v1027, 16
    %1029 = vset.pattern.permute.xlu0 %v1028
    %1030 = vperm.xlu0 %1029, %v1013
    %v1031 = vpop.permute.xlu0 %1030
    %v1032 = vlaneseq
    %v1033 = vshrl.u32 %v1032, 7
    %v1034 = vadd.s32 %v1033, 24
    %1035 = vset.pattern.permute.xlu0 %v1034
    %1036 = vperm.xlu0 %1035, %v1013
    %v1037 = vpop.permute.xlu0 %1036
    %v1038 = vperm.slane %v107, 3
    %v1039 = vlaneseq
    %v1040 = vshrl.u32 %v1039, 7
    %1042 = vset.pattern.permute.xlu0 %v1040
    %1043 = vperm.xlu0 %1042, %v1038
    %v1044 = vpop.permute.xlu0 %1043
    %v1045 = vlaneseq
    %v1046 = vshrl.u32 %v1045, 7
    %v1047 = vadd.s32 %v1046, 8
    %1048 = vset.pattern.permute.xlu0 %v1047
    %1049 = vperm.xlu0 %1048, %v1038
    %v1050 = vpop.permute.xlu0 %1049
    %v1051 = vlaneseq
    %v1052 = vshrl.u32 %v1051, 7
    %v1053 = vadd.s32 %v1052, 16
    %1054 = vset.pattern.permute.xlu0 %v1053
    %1055 = vperm.xlu0 %1054, %v1038
    %v1056 = vpop.permute.xlu0 %1055
    %v1057 = vlaneseq
    %v1058 = vshrl.u32 %v1057, 7
    %v1059 = vadd.s32 %v1058, 24
    %1060 = vset.pattern.permute.xlu0 %v1059
    %1061 = vperm.xlu0 %1060, %v1038
    %v1062 = vpop.permute.xlu0 %1061
    %v1063 = vperm.slane %v107, 4
    %v1064 = vlaneseq
    %v1065 = vshrl.u32 %v1064, 7
    %1067 = vset.pattern.permute.xlu0 %v1065
    %1068 = vperm.xlu0 %1067, %v1063
    %v1069 = vpop.permute.xlu0 %1068
    %v1070 = vlaneseq
    %v1071 = vshrl.u32 %v1070, 7
    %v1072 = vadd.s32 %v1071, 8
    %1073 = vset.pattern.permute.xlu0 %v1072
    %1074 = vperm.xlu0 %1073, %v1063
    %v1075 = vpop.permute.xlu0 %1074
    %v1076 = vlaneseq
    %v1077 = vshrl.u32 %v1076, 7
    %v1078 = vadd.s32 %v1077, 16
    %1079 = vset.pattern.permute.xlu0 %v1078
    %1080 = vperm.xlu0 %1079, %v1063
    %v1081 = vpop.permute.xlu0 %1080
    %v1082 = vlaneseq
    %v1083 = vshrl.u32 %v1082, 7
    %v1084 = vadd.s32 %v1083, 24
    %1085 = vset.pattern.permute.xlu0 %v1084
    %1086 = vperm.xlu0 %1085, %v1063
    %v1087 = vpop.permute.xlu0 %1086
    %v1088 = vperm.slane %v107, 5
    %v1089 = vlaneseq
    %v1090 = vshrl.u32 %v1089, 7
    %1092 = vset.pattern.permute.xlu0 %v1090
    %1093 = vperm.xlu0 %1092, %v1088
    %v1094 = vpop.permute.xlu0 %1093
    %v1095 = vlaneseq
    %v1096 = vshrl.u32 %v1095, 7
    %v1097 = vadd.s32 %v1096, 8
    %1098 = vset.pattern.permute.xlu0 %v1097
    %1099 = vperm.xlu0 %1098, %v1088
    %v1100 = vpop.permute.xlu0 %1099
    %v1101 = vlaneseq
    %v1102 = vshrl.u32 %v1101, 7
    %v1103 = vadd.s32 %v1102, 16
    %1104 = vset.pattern.permute.xlu0 %v1103
    %1105 = vperm.xlu0 %1104, %v1088
    %v1106 = vpop.permute.xlu0 %1105
    %v1107 = vlaneseq
    %v1108 = vshrl.u32 %v1107, 7
    %v1109 = vadd.s32 %v1108, 24
    %1110 = vset.pattern.permute.xlu0 %v1109
    %1111 = vperm.xlu0 %1110, %v1088
    %v1112 = vpop.permute.xlu0 %1111
    %v1113 = vperm.slane %v107, 6
    %v1114 = vlaneseq
    %v1115 = vshrl.u32 %v1114, 7
    %1117 = vset.pattern.permute.xlu0 %v1115
    %1118 = vperm.xlu0 %1117, %v1113
    %v1119 = vpop.permute.xlu0 %1118
    %v1120 = vlaneseq
    %v1121 = vshrl.u32 %v1120, 7
    %v1122 = vadd.s32 %v1121, 8
    %1123 = vset.pattern.permute.xlu0 %v1122
    %1124 = vperm.xlu0 %1123, %v1113
    %v1125 = vpop.permute.xlu0 %1124
    %v1126 = vlaneseq
    %v1127 = vshrl.u32 %v1126, 7
    %v1128 = vadd.s32 %v1127, 16
    %1129 = vset.pattern.permute.xlu0 %v1128
    %1130 = vperm.xlu0 %1129, %v1113
    %v1131 = vpop.permute.xlu0 %1130
    %v1132 = vlaneseq
    %v1133 = vshrl.u32 %v1132, 7
    %v1134 = vadd.s32 %v1133, 24
    %1135 = vset.pattern.permute.xlu0 %v1134
    %1136 = vperm.xlu0 %1135, %v1113
    %v1137 = vpop.permute.xlu0 %1136
    %v1138 = vperm.slane %v107, 7
    %v1139 = vlaneseq
    %v1140 = vshrl.u32 %v1139, 7
    %1142 = vset.pattern.permute.xlu0 %v1140
    %1143 = vperm.xlu0 %1142, %v1138
    %v1144 = vpop.permute.xlu0 %1143
    %v1145 = vlaneseq
    %v1146 = vshrl.u32 %v1145, 7
    %v1147 = vadd.s32 %v1146, 8
    %1148 = vset.pattern.permute.xlu0 %v1147
    %1149 = vperm.xlu0 %1148, %v1138
    %v1150 = vpop.permute.xlu0 %1149
    %v1151 = vlaneseq
    %v1152 = vshrl.u32 %v1151, 7
    %v1153 = vadd.s32 %v1152, 16
    %1154 = vset.pattern.permute.xlu0 %v1153
    %1155 = vperm.xlu0 %1154, %v1138
    %v1156 = vpop.permute.xlu0 %1155
    %v1157 = vlaneseq
    %v1158 = vshrl.u32 %v1157, 7
    %v1159 = vadd.s32 %v1158, 24
    %1160 = vset.pattern.permute.xlu0 %v1159
    %1161 = vperm.xlu0 %1160, %v1138
    %v1162 = vpop.permute.xlu0 %1161
    %v1163 = vperm.slane %v108, 0
    %v1164 = vlaneseq
    %v1165 = vshrl.u32 %v1164, 7
    %1167 = vset.pattern.permute.xlu0 %v1165
    %1168 = vperm.xlu0 %1167, %v1163
    %v1169 = vpop.permute.xlu0 %1168
    %v1170 = vlaneseq
    %v1171 = vshrl.u32 %v1170, 7
    %v1172 = vadd.s32 %v1171, 8
    %1173 = vset.pattern.permute.xlu0 %v1172
    %1174 = vperm.xlu0 %1173, %v1163
    %v1175 = vpop.permute.xlu0 %1174
    %v1176 = vlaneseq
    %v1177 = vshrl.u32 %v1176, 7
    %v1178 = vadd.s32 %v1177, 16
    %1179 = vset.pattern.permute.xlu0 %v1178
    %1180 = vperm.xlu0 %1179, %v1163
    %v1181 = vpop.permute.xlu0 %1180
    %v1182 = vlaneseq
    %v1183 = vshrl.u32 %v1182, 7
    %v1184 = vadd.s32 %v1183, 24
    %1185 = vset.pattern.permute.xlu0 %v1184
    %1186 = vperm.xlu0 %1185, %v1163
    %v1187 = vpop.permute.xlu0 %1186
    %v1188 = vperm.slane %v108, 1
    %v1189 = vlaneseq
    %v1190 = vshrl.u32 %v1189, 7
    %1192 = vset.pattern.permute.xlu0 %v1190
    %1193 = vperm.xlu0 %1192, %v1188
    %v1194 = vpop.permute.xlu0 %1193
    %v1195 = vlaneseq
    %v1196 = vshrl.u32 %v1195, 7
    %v1197 = vadd.s32 %v1196, 8
    %1198 = vset.pattern.permute.xlu0 %v1197
    %1199 = vperm.xlu0 %1198, %v1188
    %v1200 = vpop.permute.xlu0 %1199
    %v1201 = vlaneseq
    %v1202 = vshrl.u32 %v1201, 7
    %v1203 = vadd.s32 %v1202, 16
    %1204 = vset.pattern.permute.xlu0 %v1203
    %1205 = vperm.xlu0 %1204, %v1188
    %v1206 = vpop.permute.xlu0 %1205
    %v1207 = vlaneseq
    %v1208 = vshrl.u32 %v1207, 7
    %v1209 = vadd.s32 %v1208, 24
    %1210 = vset.pattern.permute.xlu0 %v1209
    %1211 = vperm.xlu0 %1210, %v1188
    %v1212 = vpop.permute.xlu0 %1211
    %v1213 = vsub.f32 %v99, %v121
    %v1214 = vsub.f32 %v100, %v127
    %v1215 = vsub.f32 %v101, %v133
    %v1216 = vsub.f32 %v102, %v139
    %v1217 = vsub.f32 %v99, %v146
    %v1218 = vsub.f32 %v100, %v152
    %v1219 = vsub.f32 %v101, %v158
    %v1220 = vsub.f32 %v102, %v164
    %v1221 = vsub.f32 %v99, %v171
    %v1222 = vsub.f32 %v100, %v177
    %v1223 = vsub.f32 %v101, %v183
    %v1224 = vsub.f32 %v102, %v189
    %v1225 = vsub.f32 %v99, %v196
    %v1226 = vsub.f32 %v100, %v202
    %v1227 = vsub.f32 %v101, %v208
    %v1228 = vsub.f32 %v102, %v214
    %v1229 = vsub.f32 %v99, %v221
    %v1230 = vsub.f32 %v100, %v227
    %v1231 = vsub.f32 %v101, %v233
    %v1232 = vsub.f32 %v102, %v239
    %v1233 = vsub.f32 %v99, %v246
    %v1234 = vsub.f32 %v100, %v252
    %v1235 = vsub.f32 %v101, %v258
    %v1236 = vsub.f32 %v102, %v264
    %v1237 = vsub.f32 %v99, %v271
    %v1238 = vsub.f32 %v100, %v277
    %v1239 = vsub.f32 %v101, %v283
    %v1240 = vsub.f32 %v102, %v289
    %v1241 = vsub.f32 %v99, %v296
    %v1242 = vsub.f32 %v100, %v302
    %v1243 = vsub.f32 %v101, %v308
    %v1244 = vsub.f32 %v102, %v314
    %v1245 = vsub.f32 %v99, %v321
    %v1246 = vsub.f32 %v100, %v327
    %v1247 = vsub.f32 %v101, %v333
    %v1248 = vsub.f32 %v102, %v339
    %v1249 = vsub.f32 %v99, %v346
    %v1250 = vsub.f32 %v100, %v352
    %v1251 = vsub.f32 %v101, %v358
    %v1252 = vsub.f32 %v102, %v364
    %v1253 = vmul.f32 %v1213, %v719
    %v1254 = vmul.f32 %v1214, %v725
    %v1255 = vmul.f32 %v1215, %v731
    %v1256 = vmul.f32 %v1216, %v737
    %v1257 = vmul.f32 %v1217, %v744
    %v1258 = vmul.f32 %v1218, %v750
    %v1259 = vmul.f32 %v1219, %v756
    %v1260 = vmul.f32 %v1220, %v762
    %v1261 = vmul.f32 %v1221, %v769
    %v1262 = vmul.f32 %v1222, %v775
    %v1263 = vmul.f32 %v1223, %v781
    %v1264 = vmul.f32 %v1224, %v787
    %v1265 = vmul.f32 %v1225, %v794
    %v1266 = vmul.f32 %v1226, %v800
    %v1267 = vmul.f32 %v1227, %v806
    %v1268 = vmul.f32 %v1228, %v812
    %v1269 = vmul.f32 %v1229, %v819
    %v1270 = vmul.f32 %v1230, %v825
    %v1271 = vmul.f32 %v1231, %v831
    %v1272 = vmul.f32 %v1232, %v837
    %v1273 = vmul.f32 %v1233, %v844
    %v1274 = vmul.f32 %v1234, %v850
    %v1275 = vmul.f32 %v1235, %v856
    %v1276 = vmul.f32 %v1236, %v862
    %v1277 = vmul.f32 %v1237, %v869
    %v1278 = vmul.f32 %v1238, %v875
    %v1279 = vmul.f32 %v1239, %v881
    %v1280 = vmul.f32 %v1240, %v887
    %v1281 = vmul.f32 %v1241, %v894
    %v1282 = vmul.f32 %v1242, %v900
    %v1283 = vmul.f32 %v1243, %v906
    %v1284 = vmul.f32 %v1244, %v912
    %v1285 = vmul.f32 %v1245, %v919
    %v1286 = vmul.f32 %v1246, %v925
    %v1287 = vmul.f32 %v1247, %v931
    %v1288 = vmul.f32 %v1248, %v937
    %v1289 = vmul.f32 %v1249, %v944
    %v1290 = vmul.f32 %v1250, %v950
    %v1291 = vmul.f32 %v1251, %v956
    %v1292 = vmul.f32 %v1252, %v962
    %v1293 = vmul.f32 %v1253, %v669
    %v1294 = vmul.f32 %v1254, %v670
    %v1295 = vmul.f32 %v1255, %v671
    %v1296 = vmul.f32 %v1256, %v672
    %v1297 = vmul.f32 %v1257, %v673
    %v1298 = vmul.f32 %v1258, %v674
    %v1299 = vmul.f32 %v1259, %v675
    %v1300 = vmul.f32 %v1260, %v676
    %v1301 = vmul.f32 %v1261, %v677
    %v1302 = vmul.f32 %v1262, %v678
    %v1303 = vmul.f32 %v1263, %v679
    %v1304 = vmul.f32 %v1264, %v680
    %v1305 = vmul.f32 %v1265, %v681
    %v1306 = vmul.f32 %v1266, %v682
    %v1307 = vmul.f32 %v1267, %v683
    %v1308 = vmul.f32 %v1268, %v684
    %v1309 = vmul.f32 %v1269, %v685
    %v1310 = vmul.f32 %v1270, %v686
    %v1311 = vmul.f32 %v1271, %v687
    %v1312 = vmul.f32 %v1272, %v688
    %v1313 = vmul.f32 %v1273, %v689
    %v1314 = vmul.f32 %v1274, %v690
    %v1315 = vmul.f32 %v1275, %v691
    %v1316 = vmul.f32 %v1276, %v692
    %v1317 = vmul.f32 %v1277, %v693
    %v1318 = vmul.f32 %v1278, %v694
    %v1319 = vmul.f32 %v1279, %v695
    %v1320 = vmul.f32 %v1280, %v696
    %v1321 = vmul.f32 %v1281, %v697
    %v1322 = vmul.f32 %v1282, %v698
    %v1323 = vmul.f32 %v1283, %v699
    %v1324 = vmul.f32 %v1284, %v700
    %v1325 = vmul.f32 %v1285, %v701
    %v1326 = vmul.f32 %v1286, %v702
    %v1327 = vmul.f32 %v1287, %v703
    %v1328 = vmul.f32 %v1288, %v704
    %v1329 = vmul.f32 %v1289, %v705
    %v1330 = vmul.f32 %v1290, %v706
    %v1331 = vmul.f32 %v1291, %v707
    %v1332 = vmul.f32 %v1292, %v708
    %v1333 = vsub.f32 %v171, %v99
    %v1334 = vsub.f32 %v177, %v100
    %v1335 = vsub.f32 %v183, %v101
    %v1336 = vsub.f32 %v189, %v102
    %v1337 = vsub.f32 %v196, %v99
    %v1338 = vsub.f32 %v202, %v100
    %v1339 = vsub.f32 %v208, %v101
    %v1340 = vsub.f32 %v214, %v102
    %v1341 = vsub.f32 %v221, %v99
    %v1342 = vsub.f32 %v227, %v100
    %v1343 = vsub.f32 %v233, %v101
    %v1344 = vsub.f32 %v239, %v102
    %v1345 = vsub.f32 %v246, %v99
    %v1346 = vsub.f32 %v252, %v100
    %v1347 = vsub.f32 %v258, %v101
    %v1348 = vsub.f32 %v264, %v102
    %v1349 = vsub.f32 %v271, %v99
    %v1350 = vsub.f32 %v277, %v100
    %v1351 = vsub.f32 %v283, %v101
    %v1352 = vsub.f32 %v289, %v102
    %v1353 = vsub.f32 %v296, %v99
    %v1354 = vsub.f32 %v302, %v100
    %v1355 = vsub.f32 %v308, %v101
    %v1356 = vsub.f32 %v314, %v102
    %v1357 = vsub.f32 %v321, %v99
    %v1358 = vsub.f32 %v327, %v100
    %v1359 = vsub.f32 %v333, %v101
    %v1360 = vsub.f32 %v339, %v102
    %v1361 = vsub.f32 %v346, %v99
    %v1362 = vsub.f32 %v352, %v100
    %v1363 = vsub.f32 %v358, %v101
    %v1364 = vsub.f32 %v364, %v102
    %v1365 = vsub.f32 %v371, %v99
    %v1366 = vsub.f32 %v377, %v100
    %v1367 = vsub.f32 %v383, %v101
    %v1368 = vsub.f32 %v389, %v102
    %v1369 = vsub.f32 %v396, %v99
    %v1370 = vsub.f32 %v402, %v100
    %v1371 = vsub.f32 %v408, %v101
    %v1372 = vsub.f32 %v414, %v102
    %v1373 = vmul.f32 %v1333, %v969
    %v1374 = vmul.f32 %v1334, %v975
    %v1375 = vmul.f32 %v1335, %v981
    %v1376 = vmul.f32 %v1336, %v987
    %v1377 = vmul.f32 %v1337, %v994
    %v1378 = vmul.f32 %v1338, %v1000
    %v1379 = vmul.f32 %v1339, %v1006
    %v1380 = vmul.f32 %v1340, %v1012
    %v1381 = vmul.f32 %v1341, %v1019
    %v1382 = vmul.f32 %v1342, %v1025
    %v1383 = vmul.f32 %v1343, %v1031
    %v1384 = vmul.f32 %v1344, %v1037
    %v1385 = vmul.f32 %v1345, %v1044
    %v1386 = vmul.f32 %v1346, %v1050
    %v1387 = vmul.f32 %v1347, %v1056
    %v1388 = vmul.f32 %v1348, %v1062
    %v1389 = vmul.f32 %v1349, %v1069
    %v1390 = vmul.f32 %v1350, %v1075
    %v1391 = vmul.f32 %v1351, %v1081
    %v1392 = vmul.f32 %v1352, %v1087
    %v1393 = vmul.f32 %v1353, %v1094
    %v1394 = vmul.f32 %v1354, %v1100
    %v1395 = vmul.f32 %v1355, %v1106
    %v1396 = vmul.f32 %v1356, %v1112
    %v1397 = vmul.f32 %v1357, %v1119
    %v1398 = vmul.f32 %v1358, %v1125
    %v1399 = vmul.f32 %v1359, %v1131
    %v1400 = vmul.f32 %v1360, %v1137
    %v1401 = vmul.f32 %v1361, %v1144
    %v1402 = vmul.f32 %v1362, %v1150
    %v1403 = vmul.f32 %v1363, %v1156
    %v1404 = vmul.f32 %v1364, %v1162
    %v1405 = vmul.f32 %v1365, %v1169
    %v1406 = vmul.f32 %v1366, %v1175
    %v1407 = vmul.f32 %v1367, %v1181
    %v1408 = vmul.f32 %v1368, %v1187
    %v1409 = vmul.f32 %v1369, %v1194
    %v1410 = vmul.f32 %v1370, %v1200
    %v1411 = vmul.f32 %v1371, %v1206
    %v1412 = vmul.f32 %v1372, %v1212
    %v1413 = vmul.f32 %v1373, %v673
    %v1414 = vmul.f32 %v1374, %v674
    %v1415 = vmul.f32 %v1375, %v675
    %v1416 = vmul.f32 %v1376, %v676
    %v1417 = vmul.f32 %v1377, %v677
    %v1418 = vmul.f32 %v1378, %v678
    %v1419 = vmul.f32 %v1379, %v679
    %v1420 = vmul.f32 %v1380, %v680
    %v1421 = vmul.f32 %v1381, %v681
    %v1422 = vmul.f32 %v1382, %v682
    %v1423 = vmul.f32 %v1383, %v683
    %v1424 = vmul.f32 %v1384, %v684
    %v1425 = vmul.f32 %v1385, %v685
    %v1426 = vmul.f32 %v1386, %v686
    %v1427 = vmul.f32 %v1387, %v687
    %v1428 = vmul.f32 %v1388, %v688
    %v1429 = vmul.f32 %v1389, %v689
    %v1430 = vmul.f32 %v1390, %v690
    %v1431 = vmul.f32 %v1391, %v691
    %v1432 = vmul.f32 %v1392, %v692
    %v1433 = vmul.f32 %v1393, %v693
    %v1434 = vmul.f32 %v1394, %v694
    %v1435 = vmul.f32 %v1395, %v695
    %v1436 = vmul.f32 %v1396, %v696
    %v1437 = vmul.f32 %v1397, %v697
    %v1438 = vmul.f32 %v1398, %v698
    %v1439 = vmul.f32 %v1399, %v699
    %v1440 = vmul.f32 %v1400, %v700
    %v1441 = vmul.f32 %v1401, %v701
    %v1442 = vmul.f32 %v1402, %v702
    %v1443 = vmul.f32 %v1403, %v703
    %v1444 = vmul.f32 %v1404, %v704
    %v1445 = vmul.f32 %v1405, %v705
    %v1446 = vmul.f32 %v1406, %v706
    %v1447 = vmul.f32 %v1407, %v707
    %v1448 = vmul.f32 %v1408, %v708
    %v1449 = vmul.f32 %v1409, %v709
    %v1450 = vmul.f32 %v1410, %v710
    %v1451 = vmul.f32 %v1411, %v711
    %v1452 = vmul.f32 %v1412, %v712
    %v1453 = vadd.f32 %v1293, %v1413
    %v1454 = vadd.f32 %v1294, %v1414
    %v1455 = vadd.f32 %v1295, %v1415
    %v1456 = vadd.f32 %v1296, %v1416
    %v1457 = vadd.f32 %v1297, %v1417
    %v1458 = vadd.f32 %v1298, %v1418
    %v1459 = vadd.f32 %v1299, %v1419
    %v1460 = vadd.f32 %v1300, %v1420
    %v1461 = vadd.f32 %v1301, %v1421
    %v1462 = vadd.f32 %v1302, %v1422
    %v1463 = vadd.f32 %v1303, %v1423
    %v1464 = vadd.f32 %v1304, %v1424
    %v1465 = vadd.f32 %v1305, %v1425
    %v1466 = vadd.f32 %v1306, %v1426
    %v1467 = vadd.f32 %v1307, %v1427
    %v1468 = vadd.f32 %v1308, %v1428
    %v1469 = vadd.f32 %v1309, %v1429
    %v1470 = vadd.f32 %v1310, %v1430
    %v1471 = vadd.f32 %v1311, %v1431
    %v1472 = vadd.f32 %v1312, %v1432
    %v1473 = vadd.f32 %v1313, %v1433
    %v1474 = vadd.f32 %v1314, %v1434
    %v1475 = vadd.f32 %v1315, %v1435
    %v1476 = vadd.f32 %v1316, %v1436
    %v1477 = vadd.f32 %v1317, %v1437
    %v1478 = vadd.f32 %v1318, %v1438
    %v1479 = vadd.f32 %v1319, %v1439
    %v1480 = vadd.f32 %v1320, %v1440
    %v1481 = vadd.f32 %v1321, %v1441
    %v1482 = vadd.f32 %v1322, %v1442
    %v1483 = vadd.f32 %v1323, %v1443
    %v1484 = vadd.f32 %v1324, %v1444
    %v1485 = vadd.f32 %v1325, %v1445
    %v1486 = vadd.f32 %v1326, %v1446
    %v1487 = vadd.f32 %v1327, %v1447
    %v1488 = vadd.f32 %v1328, %v1448
    %v1489 = vadd.f32 %v1329, %v1449
    %v1490 = vadd.f32 %v1330, %v1450
    %v1491 = vadd.f32 %v1331, %v1451
    %v1492 = vadd.f32 %v1332, %v1452
    %v1493 = vperm.slane %v109, 0
    %v1494 = vlaneseq
    %v1495 = vshrl.u32 %v1494, 7
    %1497 = vset.pattern.permute.xlu0 %v1495
    %1498 = vperm.xlu0 %1497, %v1493
    %v1499 = vpop.permute.xlu0 %1498
    %v1500 = vlaneseq
    %v1501 = vshrl.u32 %v1500, 7
    %v1502 = vadd.s32 %v1501, 8
    %1503 = vset.pattern.permute.xlu0 %v1502
    %1504 = vperm.xlu0 %1503, %v1493
    %v1505 = vpop.permute.xlu0 %1504
    %v1506 = vlaneseq
    %v1507 = vshrl.u32 %v1506, 7
    %v1508 = vadd.s32 %v1507, 16
    %1509 = vset.pattern.permute.xlu0 %v1508
    %1510 = vperm.xlu0 %1509, %v1493
    %v1511 = vpop.permute.xlu0 %1510
    %v1512 = vlaneseq
    %v1513 = vshrl.u32 %v1512, 7
    %v1514 = vadd.s32 %v1513, 24
    %1515 = vset.pattern.permute.xlu0 %v1514
    %1516 = vperm.xlu0 %1515, %v1493
    %v1517 = vpop.permute.xlu0 %1516
    %v1518 = vperm.slane %v109, 1
    %v1519 = vlaneseq
    %v1520 = vshrl.u32 %v1519, 7
    %1522 = vset.pattern.permute.xlu0 %v1520
    %1523 = vperm.xlu0 %1522, %v1518
    %v1524 = vpop.permute.xlu0 %1523
    %v1525 = vlaneseq
    %v1526 = vshrl.u32 %v1525, 7
    %v1527 = vadd.s32 %v1526, 8
    %1528 = vset.pattern.permute.xlu0 %v1527
    %1529 = vperm.xlu0 %1528, %v1518
    %v1530 = vpop.permute.xlu0 %1529
    %v1531 = vlaneseq
    %v1532 = vshrl.u32 %v1531, 7
    %v1533 = vadd.s32 %v1532, 16
    %1534 = vset.pattern.permute.xlu0 %v1533
    %1535 = vperm.xlu0 %1534, %v1518
    %v1536 = vpop.permute.xlu0 %1535
    %v1537 = vlaneseq
    %v1538 = vshrl.u32 %v1537, 7
    %v1539 = vadd.s32 %v1538, 24
    %1540 = vset.pattern.permute.xlu0 %v1539
    %1541 = vperm.xlu0 %1540, %v1518
    %v1542 = vpop.permute.xlu0 %1541
    %v1543 = vperm.slane %v109, 2
    %v1544 = vlaneseq
    %v1545 = vshrl.u32 %v1544, 7
    %1547 = vset.pattern.permute.xlu0 %v1545
    %1548 = vperm.xlu0 %1547, %v1543
    %v1549 = vpop.permute.xlu0 %1548
    %v1550 = vlaneseq
    %v1551 = vshrl.u32 %v1550, 7
    %v1552 = vadd.s32 %v1551, 8
    %1553 = vset.pattern.permute.xlu0 %v1552
    %1554 = vperm.xlu0 %1553, %v1543
    %v1555 = vpop.permute.xlu0 %1554
    %v1556 = vlaneseq
    %v1557 = vshrl.u32 %v1556, 7
    %v1558 = vadd.s32 %v1557, 16
    %1559 = vset.pattern.permute.xlu0 %v1558
    %1560 = vperm.xlu0 %1559, %v1543
    %v1561 = vpop.permute.xlu0 %1560
    %v1562 = vlaneseq
    %v1563 = vshrl.u32 %v1562, 7
    %v1564 = vadd.s32 %v1563, 24
    %1565 = vset.pattern.permute.xlu0 %v1564
    %1566 = vperm.xlu0 %1565, %v1543
    %v1567 = vpop.permute.xlu0 %1566
    %v1568 = vperm.slane %v109, 3
    %v1569 = vlaneseq
    %v1570 = vshrl.u32 %v1569, 7
    %1572 = vset.pattern.permute.xlu0 %v1570
    %1573 = vperm.xlu0 %1572, %v1568
    %v1574 = vpop.permute.xlu0 %1573
    %v1575 = vlaneseq
    %v1576 = vshrl.u32 %v1575, 7
    %v1577 = vadd.s32 %v1576, 8
    %1578 = vset.pattern.permute.xlu0 %v1577
    %1579 = vperm.xlu0 %1578, %v1568
    %v1580 = vpop.permute.xlu0 %1579
    %v1581 = vlaneseq
    %v1582 = vshrl.u32 %v1581, 7
    %v1583 = vadd.s32 %v1582, 16
    %1584 = vset.pattern.permute.xlu0 %v1583
    %1585 = vperm.xlu0 %1584, %v1568
    %v1586 = vpop.permute.xlu0 %1585
    %v1587 = vlaneseq
    %v1588 = vshrl.u32 %v1587, 7
    %v1589 = vadd.s32 %v1588, 24
    %1590 = vset.pattern.permute.xlu0 %v1589
    %1591 = vperm.xlu0 %1590, %v1568
    %v1592 = vpop.permute.xlu0 %1591
    %v1593 = vperm.slane %v109, 4
    %v1594 = vlaneseq
    %v1595 = vshrl.u32 %v1594, 7
    %1597 = vset.pattern.permute.xlu0 %v1595
    %1598 = vperm.xlu0 %1597, %v1593
    %v1599 = vpop.permute.xlu0 %1598
    %v1600 = vlaneseq
    %v1601 = vshrl.u32 %v1600, 7
    %v1602 = vadd.s32 %v1601, 8
    %1603 = vset.pattern.permute.xlu0 %v1602
    %1604 = vperm.xlu0 %1603, %v1593
    %v1605 = vpop.permute.xlu0 %1604
    %v1606 = vlaneseq
    %v1607 = vshrl.u32 %v1606, 7
    %v1608 = vadd.s32 %v1607, 16
    %1609 = vset.pattern.permute.xlu0 %v1608
    %1610 = vperm.xlu0 %1609, %v1593
    %v1611 = vpop.permute.xlu0 %1610
    %v1612 = vlaneseq
    %v1613 = vshrl.u32 %v1612, 7
    %v1614 = vadd.s32 %v1613, 24
    %1615 = vset.pattern.permute.xlu0 %v1614
    %1616 = vperm.xlu0 %1615, %v1593
    %v1617 = vpop.permute.xlu0 %1616
    %v1618 = vperm.slane %v109, 5
    %v1619 = vlaneseq
    %v1620 = vshrl.u32 %v1619, 7
    %1622 = vset.pattern.permute.xlu0 %v1620
    %1623 = vperm.xlu0 %1622, %v1618
    %v1624 = vpop.permute.xlu0 %1623
    %v1625 = vlaneseq
    %v1626 = vshrl.u32 %v1625, 7
    %v1627 = vadd.s32 %v1626, 8
    %1628 = vset.pattern.permute.xlu0 %v1627
    %1629 = vperm.xlu0 %1628, %v1618
    %v1630 = vpop.permute.xlu0 %1629
    %v1631 = vlaneseq
    %v1632 = vshrl.u32 %v1631, 7
    %v1633 = vadd.s32 %v1632, 16
    %1634 = vset.pattern.permute.xlu0 %v1633
    %1635 = vperm.xlu0 %1634, %v1618
    %v1636 = vpop.permute.xlu0 %1635
    %v1637 = vlaneseq
    %v1638 = vshrl.u32 %v1637, 7
    %v1639 = vadd.s32 %v1638, 24
    %1640 = vset.pattern.permute.xlu0 %v1639
    %1641 = vperm.xlu0 %1640, %v1618
    %v1642 = vpop.permute.xlu0 %1641
    %v1643 = vperm.slane %v109, 6
    %v1644 = vlaneseq
    %v1645 = vshrl.u32 %v1644, 7
    %1647 = vset.pattern.permute.xlu0 %v1645
    %1648 = vperm.xlu0 %1647, %v1643
    %v1649 = vpop.permute.xlu0 %1648
    %v1650 = vlaneseq
    %v1651 = vshrl.u32 %v1650, 7
    %v1652 = vadd.s32 %v1651, 8
    %1653 = vset.pattern.permute.xlu0 %v1652
    %1654 = vperm.xlu0 %1653, %v1643
    %v1655 = vpop.permute.xlu0 %1654
    %v1656 = vlaneseq
    %v1657 = vshrl.u32 %v1656, 7
    %v1658 = vadd.s32 %v1657, 16
    %1659 = vset.pattern.permute.xlu0 %v1658
    %1660 = vperm.xlu0 %1659, %v1643
    %v1661 = vpop.permute.xlu0 %1660
    %v1662 = vlaneseq
    %v1663 = vshrl.u32 %v1662, 7
    %v1664 = vadd.s32 %v1663, 24
    %1665 = vset.pattern.permute.xlu0 %v1664
    %1666 = vperm.xlu0 %1665, %v1643
    %v1667 = vpop.permute.xlu0 %1666
    %v1668 = vperm.slane %v109, 7
    %v1669 = vlaneseq
    %v1670 = vshrl.u32 %v1669, 7
    %1672 = vset.pattern.permute.xlu0 %v1670
    %1673 = vperm.xlu0 %1672, %v1668
    %v1674 = vpop.permute.xlu0 %1673
    %v1675 = vlaneseq
    %v1676 = vshrl.u32 %v1675, 7
    %v1677 = vadd.s32 %v1676, 8
    %1678 = vset.pattern.permute.xlu0 %v1677
    %1679 = vperm.xlu0 %1678, %v1668
    %v1680 = vpop.permute.xlu0 %1679
    %v1681 = vlaneseq
    %v1682 = vshrl.u32 %v1681, 7
    %v1683 = vadd.s32 %v1682, 16
    %1684 = vset.pattern.permute.xlu0 %v1683
    %1685 = vperm.xlu0 %1684, %v1668
    %v1686 = vpop.permute.xlu0 %1685
    %v1687 = vlaneseq
    %v1688 = vshrl.u32 %v1687, 7
    %v1689 = vadd.s32 %v1688, 24
    %1690 = vset.pattern.permute.xlu0 %v1689
    %1691 = vperm.xlu0 %1690, %v1668
    %v1692 = vpop.permute.xlu0 %1691
    %v1693 = vperm.slane %v110, 0
    %v1694 = vlaneseq
    %v1695 = vshrl.u32 %v1694, 7
    %1697 = vset.pattern.permute.xlu0 %v1695
    %1698 = vperm.xlu0 %1697, %v1693
    %v1699 = vpop.permute.xlu0 %1698
    %v1700 = vlaneseq
    %v1701 = vshrl.u32 %v1700, 7
    %v1702 = vadd.s32 %v1701, 8
    %1703 = vset.pattern.permute.xlu0 %v1702
    %1704 = vperm.xlu0 %1703, %v1693
    %v1705 = vpop.permute.xlu0 %1704
    %v1706 = vlaneseq
    %v1707 = vshrl.u32 %v1706, 7
    %v1708 = vadd.s32 %v1707, 16
    %1709 = vset.pattern.permute.xlu0 %v1708
    %1710 = vperm.xlu0 %1709, %v1693
    %v1711 = vpop.permute.xlu0 %1710
    %v1712 = vlaneseq
    %v1713 = vshrl.u32 %v1712, 7
    %v1714 = vadd.s32 %v1713, 24
    %1715 = vset.pattern.permute.xlu0 %v1714
    %1716 = vperm.xlu0 %1715, %v1693
    %v1717 = vpop.permute.xlu0 %1716
    %v1718 = vperm.slane %v111, 0
    %v1719 = vlaneseq
    %v1720 = vshrl.u32 %v1719, 7
    %1722 = vset.pattern.permute.xlu0 %v1720
    %1723 = vperm.xlu0 %1722, %v1718
    %v1724 = vpop.permute.xlu0 %1723
    %v1725 = vlaneseq
    %v1726 = vshrl.u32 %v1725, 7
    %v1727 = vadd.s32 %v1726, 8
    %1728 = vset.pattern.permute.xlu0 %v1727
    %1729 = vperm.xlu0 %1728, %v1718
    %v1730 = vpop.permute.xlu0 %1729
    %v1731 = vlaneseq
    %v1732 = vshrl.u32 %v1731, 7
    %v1733 = vadd.s32 %v1732, 16
    %1734 = vset.pattern.permute.xlu0 %v1733
    %1735 = vperm.xlu0 %1734, %v1718
    %v1736 = vpop.permute.xlu0 %1735
    %v1737 = vlaneseq
    %v1738 = vshrl.u32 %v1737, 7
    %v1739 = vadd.s32 %v1738, 24
    %1740 = vset.pattern.permute.xlu0 %v1739
    %1741 = vperm.xlu0 %1740, %v1718
    %v1742 = vpop.permute.xlu0 %1741
    %v1743 = vperm.slane %v111, 1
    %v1744 = vlaneseq
    %v1745 = vshrl.u32 %v1744, 7
    %1747 = vset.pattern.permute.xlu0 %v1745
    %1748 = vperm.xlu0 %1747, %v1743
    %v1749 = vpop.permute.xlu0 %1748
    %v1750 = vlaneseq
    %v1751 = vshrl.u32 %v1750, 7
    %v1752 = vadd.s32 %v1751, 8
    %1753 = vset.pattern.permute.xlu0 %v1752
    %1754 = vperm.xlu0 %1753, %v1743
    %v1755 = vpop.permute.xlu0 %1754
    %v1756 = vlaneseq
    %v1757 = vshrl.u32 %v1756, 7
    %v1758 = vadd.s32 %v1757, 16
    %1759 = vset.pattern.permute.xlu0 %v1758
    %1760 = vperm.xlu0 %1759, %v1743
    %v1761 = vpop.permute.xlu0 %1760
    %v1762 = vlaneseq
    %v1763 = vshrl.u32 %v1762, 7
    %v1764 = vadd.s32 %v1763, 24
    %1765 = vset.pattern.permute.xlu0 %v1764
    %1766 = vperm.xlu0 %1765, %v1743
    %v1767 = vpop.permute.xlu0 %1766
    %v1768 = vperm.slane %v111, 2
    %v1769 = vlaneseq
    %v1770 = vshrl.u32 %v1769, 7
    %1772 = vset.pattern.permute.xlu0 %v1770
    %1773 = vperm.xlu0 %1772, %v1768
    %v1774 = vpop.permute.xlu0 %1773
    %v1775 = vlaneseq
    %v1776 = vshrl.u32 %v1775, 7
    %v1777 = vadd.s32 %v1776, 8
    %1778 = vset.pattern.permute.xlu0 %v1777
    %1779 = vperm.xlu0 %1778, %v1768
    %v1780 = vpop.permute.xlu0 %1779
    %v1781 = vlaneseq
    %v1782 = vshrl.u32 %v1781, 7
    %v1783 = vadd.s32 %v1782, 16
    %1784 = vset.pattern.permute.xlu0 %v1783
    %1785 = vperm.xlu0 %1784, %v1768
    %v1786 = vpop.permute.xlu0 %1785
    %v1787 = vlaneseq
    %v1788 = vshrl.u32 %v1787, 7
    %v1789 = vadd.s32 %v1788, 24
    %1790 = vset.pattern.permute.xlu0 %v1789
    %1791 = vperm.xlu0 %1790, %v1768
    %v1792 = vpop.permute.xlu0 %1791
    %v1793 = vperm.slane %v111, 3
    %v1794 = vlaneseq
    %v1795 = vshrl.u32 %v1794, 7
    %1797 = vset.pattern.permute.xlu0 %v1795
    %1798 = vperm.xlu0 %1797, %v1793
    %v1799 = vpop.permute.xlu0 %1798
    %v1800 = vlaneseq
    %v1801 = vshrl.u32 %v1800, 7
    %v1802 = vadd.s32 %v1801, 8
    %1803 = vset.pattern.permute.xlu0 %v1802
    %1804 = vperm.xlu0 %1803, %v1793
    %v1805 = vpop.permute.xlu0 %1804
    %v1806 = vlaneseq
    %v1807 = vshrl.u32 %v1806, 7
    %v1808 = vadd.s32 %v1807, 16
    %1809 = vset.pattern.permute.xlu0 %v1808
    %1810 = vperm.xlu0 %1809, %v1793
    %v1811 = vpop.permute.xlu0 %1810
    %v1812 = vlaneseq
    %v1813 = vshrl.u32 %v1812, 7
    %v1814 = vadd.s32 %v1813, 24
    %1815 = vset.pattern.permute.xlu0 %v1814
    %1816 = vperm.xlu0 %1815, %v1793
    %v1817 = vpop.permute.xlu0 %1816
    %v1818 = vperm.slane %v111, 4
    %v1819 = vlaneseq
    %v1820 = vshrl.u32 %v1819, 7
    %1822 = vset.pattern.permute.xlu0 %v1820
    %1823 = vperm.xlu0 %1822, %v1818
    %v1824 = vpop.permute.xlu0 %1823
    %v1825 = vlaneseq
    %v1826 = vshrl.u32 %v1825, 7
    %v1827 = vadd.s32 %v1826, 8
    %1828 = vset.pattern.permute.xlu0 %v1827
    %1829 = vperm.xlu0 %1828, %v1818
    %v1830 = vpop.permute.xlu0 %1829
    %v1831 = vlaneseq
    %v1832 = vshrl.u32 %v1831, 7
    %v1833 = vadd.s32 %v1832, 16
    %1834 = vset.pattern.permute.xlu0 %v1833
    %1835 = vperm.xlu0 %1834, %v1818
    %v1836 = vpop.permute.xlu0 %1835
    %v1837 = vlaneseq
    %v1838 = vshrl.u32 %v1837, 7
    %v1839 = vadd.s32 %v1838, 24
    %1840 = vset.pattern.permute.xlu0 %v1839
    %1841 = vperm.xlu0 %1840, %v1818
    %v1842 = vpop.permute.xlu0 %1841
    %v1843 = vperm.slane %v111, 5
    %v1844 = vlaneseq
    %v1845 = vshrl.u32 %v1844, 7
    %1847 = vset.pattern.permute.xlu0 %v1845
    %1848 = vperm.xlu0 %1847, %v1843
    %v1849 = vpop.permute.xlu0 %1848
    %v1850 = vlaneseq
    %v1851 = vshrl.u32 %v1850, 7
    %v1852 = vadd.s32 %v1851, 8
    %1853 = vset.pattern.permute.xlu0 %v1852
    %1854 = vperm.xlu0 %1853, %v1843
    %v1855 = vpop.permute.xlu0 %1854
    %v1856 = vlaneseq
    %v1857 = vshrl.u32 %v1856, 7
    %v1858 = vadd.s32 %v1857, 16
    %1859 = vset.pattern.permute.xlu0 %v1858
    %1860 = vperm.xlu0 %1859, %v1843
    %v1861 = vpop.permute.xlu0 %1860
    %v1862 = vlaneseq
    %v1863 = vshrl.u32 %v1862, 7
    %v1864 = vadd.s32 %v1863, 24
    %1865 = vset.pattern.permute.xlu0 %v1864
    %1866 = vperm.xlu0 %1865, %v1843
    %v1867 = vpop.permute.xlu0 %1866
    %v1868 = vperm.slane %v111, 6
    %v1869 = vlaneseq
    %v1870 = vshrl.u32 %v1869, 7
    %1872 = vset.pattern.permute.xlu0 %v1870
    %1873 = vperm.xlu0 %1872, %v1868
    %v1874 = vpop.permute.xlu0 %1873
    %v1875 = vlaneseq
    %v1876 = vshrl.u32 %v1875, 7
    %v1877 = vadd.s32 %v1876, 8
    %1878 = vset.pattern.permute.xlu0 %v1877
    %1879 = vperm.xlu0 %1878, %v1868
    %v1880 = vpop.permute.xlu0 %1879
    %v1881 = vlaneseq
    %v1882 = vshrl.u32 %v1881, 7
    %v1883 = vadd.s32 %v1882, 16
    %1884 = vset.pattern.permute.xlu0 %v1883
    %1885 = vperm.xlu0 %1884, %v1868
    %v1886 = vpop.permute.xlu0 %1885
    %v1887 = vlaneseq
    %v1888 = vshrl.u32 %v1887, 7
    %v1889 = vadd.s32 %v1888, 24
    %1890 = vset.pattern.permute.xlu0 %v1889
    %1891 = vperm.xlu0 %1890, %v1868
    %v1892 = vpop.permute.xlu0 %1891
    %v1893 = vperm.slane %v111, 7
    %v1894 = vlaneseq
    %v1895 = vshrl.u32 %v1894, 7
    %1897 = vset.pattern.permute.xlu0 %v1895
    %1898 = vperm.xlu0 %1897, %v1893
    %v1899 = vpop.permute.xlu0 %1898
    %v1900 = vlaneseq
    %v1901 = vshrl.u32 %v1900, 7
    %v1902 = vadd.s32 %v1901, 8
    %1903 = vset.pattern.permute.xlu0 %v1902
    %1904 = vperm.xlu0 %1903, %v1893
    %v1905 = vpop.permute.xlu0 %1904
    %v1906 = vlaneseq
    %v1907 = vshrl.u32 %v1906, 7
    %v1908 = vadd.s32 %v1907, 16
    %1909 = vset.pattern.permute.xlu0 %v1908
    %1910 = vperm.xlu0 %1909, %v1893
    %v1911 = vpop.permute.xlu0 %1910
    %v1912 = vlaneseq
    %v1913 = vshrl.u32 %v1912, 7
    %v1914 = vadd.s32 %v1913, 24
    %1915 = vset.pattern.permute.xlu0 %v1914
    %1916 = vperm.xlu0 %1915, %v1893
    %v1917 = vpop.permute.xlu0 %1916
    %v1918 = vperm.slane %v112, 0
    %v1919 = vlaneseq
    %v1920 = vshrl.u32 %v1919, 7
    %1922 = vset.pattern.permute.xlu0 %v1920
    %1923 = vperm.xlu0 %1922, %v1918
    %v1924 = vpop.permute.xlu0 %1923
    %v1925 = vlaneseq
    %v1926 = vshrl.u32 %v1925, 7
    %v1927 = vadd.s32 %v1926, 8
    %1928 = vset.pattern.permute.xlu0 %v1927
    %1929 = vperm.xlu0 %1928, %v1918
    %v1930 = vpop.permute.xlu0 %1929
    %v1931 = vlaneseq
    %v1932 = vshrl.u32 %v1931, 7
    %v1933 = vadd.s32 %v1932, 16
    %1934 = vset.pattern.permute.xlu0 %v1933
    %1935 = vperm.xlu0 %1934, %v1918
    %v1936 = vpop.permute.xlu0 %1935
    %v1937 = vlaneseq
    %v1938 = vshrl.u32 %v1937, 7
    %v1939 = vadd.s32 %v1938, 24
    %1940 = vset.pattern.permute.xlu0 %v1939
    %1941 = vperm.xlu0 %1940, %v1918
    %v1942 = vpop.permute.xlu0 %1941
    %v1943 = vmul.f32 %v1213, %v1499
    %v1944 = vmul.f32 %v1214, %v1505
    %v1945 = vmul.f32 %v1215, %v1511
    %v1946 = vmul.f32 %v1216, %v1517
    %v1947 = vmul.f32 %v1217, %v1524
    %v1948 = vmul.f32 %v1218, %v1530
    %v1949 = vmul.f32 %v1219, %v1536
    %v1950 = vmul.f32 %v1220, %v1542
    %v1951 = vmul.f32 %v1221, %v1549
    %v1952 = vmul.f32 %v1222, %v1555
    %v1953 = vmul.f32 %v1223, %v1561
    %v1954 = vmul.f32 %v1224, %v1567
    %v1955 = vmul.f32 %v1225, %v1574
    %v1956 = vmul.f32 %v1226, %v1580
    %v1957 = vmul.f32 %v1227, %v1586
    %v1958 = vmul.f32 %v1228, %v1592
    %v1959 = vmul.f32 %v1229, %v1599
    %v1960 = vmul.f32 %v1230, %v1605
    %v1961 = vmul.f32 %v1231, %v1611
    %v1962 = vmul.f32 %v1232, %v1617
    %v1963 = vmul.f32 %v1233, %v1624
    %v1964 = vmul.f32 %v1234, %v1630
    %v1965 = vmul.f32 %v1235, %v1636
    %v1966 = vmul.f32 %v1236, %v1642
    %v1967 = vmul.f32 %v1237, %v1649
    %v1968 = vmul.f32 %v1238, %v1655
    %v1969 = vmul.f32 %v1239, %v1661
    %v1970 = vmul.f32 %v1240, %v1667
    %v1971 = vmul.f32 %v1241, %v1674
    %v1972 = vmul.f32 %v1242, %v1680
    %v1973 = vmul.f32 %v1243, %v1686
    %v1974 = vmul.f32 %v1244, %v1692
    %v1975 = vmul.f32 %v1245, %v1699
    %v1976 = vmul.f32 %v1246, %v1705
    %v1977 = vmul.f32 %v1247, %v1711
    %v1978 = vmul.f32 %v1248, %v1717
    %v1979 = vmul.f32 %v1943, %v1453
    %v1980 = vmul.f32 %v1944, %v1454
    %v1981 = vmul.f32 %v1945, %v1455
    %v1982 = vmul.f32 %v1946, %v1456
    %v1983 = vmul.f32 %v1947, %v1457
    %v1984 = vmul.f32 %v1948, %v1458
    %v1985 = vmul.f32 %v1949, %v1459
    %v1986 = vmul.f32 %v1950, %v1460
    %v1987 = vmul.f32 %v1951, %v1461
    %v1988 = vmul.f32 %v1952, %v1462
    %v1989 = vmul.f32 %v1953, %v1463
    %v1990 = vmul.f32 %v1954, %v1464
    %v1991 = vmul.f32 %v1955, %v1465
    %v1992 = vmul.f32 %v1956, %v1466
    %v1993 = vmul.f32 %v1957, %v1467
    %v1994 = vmul.f32 %v1958, %v1468
    %v1995 = vmul.f32 %v1959, %v1469
    %v1996 = vmul.f32 %v1960, %v1470
    %v1997 = vmul.f32 %v1961, %v1471
    %v1998 = vmul.f32 %v1962, %v1472
    %v1999 = vmul.f32 %v1963, %v1473
    %v2000 = vmul.f32 %v1964, %v1474
    %v2001 = vmul.f32 %v1965, %v1475
    %v2002 = vmul.f32 %v1966, %v1476
    %v2003 = vmul.f32 %v1967, %v1477
    %v2004 = vmul.f32 %v1968, %v1478
    %v2005 = vmul.f32 %v1969, %v1479
    %v2006 = vmul.f32 %v1970, %v1480
    %v2007 = vmul.f32 %v1971, %v1481
    %v2008 = vmul.f32 %v1972, %v1482
    %v2009 = vmul.f32 %v1973, %v1483
    %v2010 = vmul.f32 %v1974, %v1484
    %v2011 = vmul.f32 %v1975, %v1485
    %v2012 = vmul.f32 %v1976, %v1486
    %v2013 = vmul.f32 %v1977, %v1487
    %v2014 = vmul.f32 %v1978, %v1488
    %v2015 = vmul.f32 %v1337, %v1724
    %v2016 = vmul.f32 %v1338, %v1730
    %v2017 = vmul.f32 %v1339, %v1736
    %v2018 = vmul.f32 %v1340, %v1742
    %v2019 = vmul.f32 %v1341, %v1749
    %v2020 = vmul.f32 %v1342, %v1755
    %v2021 = vmul.f32 %v1343, %v1761
    %v2022 = vmul.f32 %v1344, %v1767
    %v2023 = vmul.f32 %v1345, %v1774
    %v2024 = vmul.f32 %v1346, %v1780
    %v2025 = vmul.f32 %v1347, %v1786
    %v2026 = vmul.f32 %v1348, %v1792
    %v2027 = vmul.f32 %v1349, %v1799
    %v2028 = vmul.f32 %v1350, %v1805
    %v2029 = vmul.f32 %v1351, %v1811
    %v2030 = vmul.f32 %v1352, %v1817
    %v2031 = vmul.f32 %v1353, %v1824
    %v2032 = vmul.f32 %v1354, %v1830
    %v2033 = vmul.f32 %v1355, %v1836
    %v2034 = vmul.f32 %v1356, %v1842
    %v2035 = vmul.f32 %v1357, %v1849
    %v2036 = vmul.f32 %v1358, %v1855
    %v2037 = vmul.f32 %v1359, %v1861
    %v2038 = vmul.f32 %v1360, %v1867
    %v2039 = vmul.f32 %v1361, %v1874
    %v2040 = vmul.f32 %v1362, %v1880
    %v2041 = vmul.f32 %v1363, %v1886
    %v2042 = vmul.f32 %v1364, %v1892
    %v2043 = vmul.f32 %v1365, %v1899
    %v2044 = vmul.f32 %v1366, %v1905
    %v2045 = vmul.f32 %v1367, %v1911
    %v2046 = vmul.f32 %v1368, %v1917
    %v2047 = vmul.f32 %v1369, %v1924
    %v2048 = vmul.f32 %v1370, %v1930
    %v2049 = vmul.f32 %v1371, %v1936
    %v2050 = vmul.f32 %v1372, %v1942
    %v2051 = vmul.f32 %v2015, %v1457
    %v2052 = vmul.f32 %v2016, %v1458
    %v2053 = vmul.f32 %v2017, %v1459
    %v2054 = vmul.f32 %v2018, %v1460
    %v2055 = vmul.f32 %v2019, %v1461
    %v2056 = vmul.f32 %v2020, %v1462
    %v2057 = vmul.f32 %v2021, %v1463
    %v2058 = vmul.f32 %v2022, %v1464
    %v2059 = vmul.f32 %v2023, %v1465
    %v2060 = vmul.f32 %v2024, %v1466
    %v2061 = vmul.f32 %v2025, %v1467
    %v2062 = vmul.f32 %v2026, %v1468
    %v2063 = vmul.f32 %v2027, %v1469
    %v2064 = vmul.f32 %v2028, %v1470
    %v2065 = vmul.f32 %v2029, %v1471
    %v2066 = vmul.f32 %v2030, %v1472
    %v2067 = vmul.f32 %v2031, %v1473
    %v2068 = vmul.f32 %v2032, %v1474
    %v2069 = vmul.f32 %v2033, %v1475
    %v2070 = vmul.f32 %v2034, %v1476
    %v2071 = vmul.f32 %v2035, %v1477
    %v2072 = vmul.f32 %v2036, %v1478
    %v2073 = vmul.f32 %v2037, %v1479
    %v2074 = vmul.f32 %v2038, %v1480
    %v2075 = vmul.f32 %v2039, %v1481
    %v2076 = vmul.f32 %v2040, %v1482
    %v2077 = vmul.f32 %v2041, %v1483
    %v2078 = vmul.f32 %v2042, %v1484
    %v2079 = vmul.f32 %v2043, %v1485
    %v2080 = vmul.f32 %v2044, %v1486
    %v2081 = vmul.f32 %v2045, %v1487
    %v2082 = vmul.f32 %v2046, %v1488
    %v2083 = vmul.f32 %v2047, %v1489
    %v2084 = vmul.f32 %v2048, %v1490
    %v2085 = vmul.f32 %v2049, %v1491
    %v2086 = vmul.f32 %v2050, %v1492
    %v2087 = vadd.f32 %v1979, %v2051
    %v2088 = vadd.f32 %v1980, %v2052
    %v2089 = vadd.f32 %v1981, %v2053
    %v2090 = vadd.f32 %v1982, %v2054
    %v2091 = vadd.f32 %v1983, %v2055
    %v2092 = vadd.f32 %v1984, %v2056
    %v2093 = vadd.f32 %v1985, %v2057
    %v2094 = vadd.f32 %v1986, %v2058
    %v2095 = vadd.f32 %v1987, %v2059
    %v2096 = vadd.f32 %v1988, %v2060
    %v2097 = vadd.f32 %v1989, %v2061
    %v2098 = vadd.f32 %v1990, %v2062
    %v2099 = vadd.f32 %v1991, %v2063
    %v2100 = vadd.f32 %v1992, %v2064
    %v2101 = vadd.f32 %v1993, %v2065
    %v2102 = vadd.f32 %v1994, %v2066
    %v2103 = vadd.f32 %v1995, %v2067
    %v2104 = vadd.f32 %v1996, %v2068
    %v2105 = vadd.f32 %v1997, %v2069
    %v2106 = vadd.f32 %v1998, %v2070
    %v2107 = vadd.f32 %v1999, %v2071
    %v2108 = vadd.f32 %v2000, %v2072
    %v2109 = vadd.f32 %v2001, %v2073
    %v2110 = vadd.f32 %v2002, %v2074
    %v2111 = vadd.f32 %v2003, %v2075
    %v2112 = vadd.f32 %v2004, %v2076
    %v2113 = vadd.f32 %v2005, %v2077
    %v2114 = vadd.f32 %v2006, %v2078
    %v2115 = vadd.f32 %v2007, %v2079
    %v2116 = vadd.f32 %v2008, %v2080
    %v2117 = vadd.f32 %v2009, %v2081
    %v2118 = vadd.f32 %v2010, %v2082
    %v2119 = vadd.f32 %v2011, %v2083
    %v2120 = vadd.f32 %v2012, %v2084
    %v2121 = vadd.f32 %v2013, %v2085
    %v2122 = vadd.f32 %v2014, %v2086
    %v2123 = vperm.slane %v113, 0
    %v2124 = vlaneseq
    %v2125 = vshrl.u32 %v2124, 7
    %2127 = vset.pattern.permute.xlu0 %v2125
    %2128 = vperm.xlu0 %2127, %v2123
    %v2129 = vpop.permute.xlu0 %2128
    %v2130 = vlaneseq
    %v2131 = vshrl.u32 %v2130, 7
    %v2132 = vadd.s32 %v2131, 8
    %2133 = vset.pattern.permute.xlu0 %v2132
    %2134 = vperm.xlu0 %2133, %v2123
    %v2135 = vpop.permute.xlu0 %2134
    %v2136 = vlaneseq
    %v2137 = vshrl.u32 %v2136, 7
    %v2138 = vadd.s32 %v2137, 16
    %2139 = vset.pattern.permute.xlu0 %v2138
    %2140 = vperm.xlu0 %2139, %v2123
    %v2141 = vpop.permute.xlu0 %2140
    %v2142 = vlaneseq
    %v2143 = vshrl.u32 %v2142, 7
    %v2144 = vadd.s32 %v2143, 24
    %2145 = vset.pattern.permute.xlu0 %v2144
    %2146 = vperm.xlu0 %2145, %v2123
    %v2147 = vpop.permute.xlu0 %2146
    %v2148 = vperm.slane %v113, 1
    %v2149 = vlaneseq
    %v2150 = vshrl.u32 %v2149, 7
    %2152 = vset.pattern.permute.xlu0 %v2150
    %2153 = vperm.xlu0 %2152, %v2148
    %v2154 = vpop.permute.xlu0 %2153
    %v2155 = vlaneseq
    %v2156 = vshrl.u32 %v2155, 7
    %v2157 = vadd.s32 %v2156, 8
    %2158 = vset.pattern.permute.xlu0 %v2157
    %2159 = vperm.xlu0 %2158, %v2148
    %v2160 = vpop.permute.xlu0 %2159
    %v2161 = vlaneseq
    %v2162 = vshrl.u32 %v2161, 7
    %v2163 = vadd.s32 %v2162, 16
    %2164 = vset.pattern.permute.xlu0 %v2163
    %2165 = vperm.xlu0 %2164, %v2148
    %v2166 = vpop.permute.xlu0 %2165
    %v2167 = vlaneseq
    %v2168 = vshrl.u32 %v2167, 7
    %v2169 = vadd.s32 %v2168, 24
    %2170 = vset.pattern.permute.xlu0 %v2169
    %2171 = vperm.xlu0 %2170, %v2148
    %v2172 = vpop.permute.xlu0 %2171
    %v2173 = vperm.slane %v113, 2
    %v2174 = vlaneseq
    %v2175 = vshrl.u32 %v2174, 7
    %2177 = vset.pattern.permute.xlu0 %v2175
    %2178 = vperm.xlu0 %2177, %v2173
    %v2179 = vpop.permute.xlu0 %2178
    %v2180 = vlaneseq
    %v2181 = vshrl.u32 %v2180, 7
    %v2182 = vadd.s32 %v2181, 8
    %2183 = vset.pattern.permute.xlu0 %v2182
    %2184 = vperm.xlu0 %2183, %v2173
    %v2185 = vpop.permute.xlu0 %2184
    %v2186 = vlaneseq
    %v2187 = vshrl.u32 %v2186, 7
    %v2188 = vadd.s32 %v2187, 16
    %2189 = vset.pattern.permute.xlu0 %v2188
    %2190 = vperm.xlu0 %2189, %v2173
    %v2191 = vpop.permute.xlu0 %2190
    %v2192 = vlaneseq
    %v2193 = vshrl.u32 %v2192, 7
    %v2194 = vadd.s32 %v2193, 24
    %2195 = vset.pattern.permute.xlu0 %v2194
    %2196 = vperm.xlu0 %2195, %v2173
    %v2197 = vpop.permute.xlu0 %2196
    %v2198 = vperm.slane %v113, 3
    %v2199 = vlaneseq
    %v2200 = vshrl.u32 %v2199, 7
    %2202 = vset.pattern.permute.xlu0 %v2200
    %2203 = vperm.xlu0 %2202, %v2198
    %v2204 = vpop.permute.xlu0 %2203
    %v2205 = vlaneseq
    %v2206 = vshrl.u32 %v2205, 7
    %v2207 = vadd.s32 %v2206, 8
    %2208 = vset.pattern.permute.xlu0 %v2207
    %2209 = vperm.xlu0 %2208, %v2198
    %v2210 = vpop.permute.xlu0 %2209
    %v2211 = vlaneseq
    %v2212 = vshrl.u32 %v2211, 7
    %v2213 = vadd.s32 %v2212, 16
    %2214 = vset.pattern.permute.xlu0 %v2213
    %2215 = vperm.xlu0 %2214, %v2198
    %v2216 = vpop.permute.xlu0 %2215
    %v2217 = vlaneseq
    %v2218 = vshrl.u32 %v2217, 7
    %v2219 = vadd.s32 %v2218, 24
    %2220 = vset.pattern.permute.xlu0 %v2219
    %2221 = vperm.xlu0 %2220, %v2198
    %v2222 = vpop.permute.xlu0 %2221
    %v2223 = vperm.slane %v113, 4
    %v2224 = vlaneseq
    %v2225 = vshrl.u32 %v2224, 7
    %2227 = vset.pattern.permute.xlu0 %v2225
    %2228 = vperm.xlu0 %2227, %v2223
    %v2229 = vpop.permute.xlu0 %2228
    %v2230 = vlaneseq
    %v2231 = vshrl.u32 %v2230, 7
    %v2232 = vadd.s32 %v2231, 8
    %2233 = vset.pattern.permute.xlu0 %v2232
    %2234 = vperm.xlu0 %2233, %v2223
    %v2235 = vpop.permute.xlu0 %2234
    %v2236 = vlaneseq
    %v2237 = vshrl.u32 %v2236, 7
    %v2238 = vadd.s32 %v2237, 16
    %2239 = vset.pattern.permute.xlu0 %v2238
    %2240 = vperm.xlu0 %2239, %v2223
    %v2241 = vpop.permute.xlu0 %2240
    %v2242 = vlaneseq
    %v2243 = vshrl.u32 %v2242, 7
    %v2244 = vadd.s32 %v2243, 24
    %2245 = vset.pattern.permute.xlu0 %v2244
    %2246 = vperm.xlu0 %2245, %v2223
    %v2247 = vpop.permute.xlu0 %2246
    %v2248 = vperm.slane %v113, 5
    %v2249 = vlaneseq
    %v2250 = vshrl.u32 %v2249, 7
    %2252 = vset.pattern.permute.xlu0 %v2250
    %2253 = vperm.xlu0 %2252, %v2248
    %v2254 = vpop.permute.xlu0 %2253
    %v2255 = vlaneseq
    %v2256 = vshrl.u32 %v2255, 7
    %v2257 = vadd.s32 %v2256, 8
    %2258 = vset.pattern.permute.xlu0 %v2257
    %2259 = vperm.xlu0 %2258, %v2248
    %v2260 = vpop.permute.xlu0 %2259
    %v2261 = vlaneseq
    %v2262 = vshrl.u32 %v2261, 7
    %v2263 = vadd.s32 %v2262, 16
    %2264 = vset.pattern.permute.xlu0 %v2263
    %2265 = vperm.xlu0 %2264, %v2248
    %v2266 = vpop.permute.xlu0 %2265
    %v2267 = vlaneseq
    %v2268 = vshrl.u32 %v2267, 7
    %v2269 = vadd.s32 %v2268, 24
    %2270 = vset.pattern.permute.xlu0 %v2269
    %2271 = vperm.xlu0 %2270, %v2248
    %v2272 = vpop.permute.xlu0 %2271
    %v2273 = vperm.slane %v113, 6
    %v2274 = vlaneseq
    %v2275 = vshrl.u32 %v2274, 7
    %2277 = vset.pattern.permute.xlu0 %v2275
    %2278 = vperm.xlu0 %2277, %v2273
    %v2279 = vpop.permute.xlu0 %2278
    %v2280 = vlaneseq
    %v2281 = vshrl.u32 %v2280, 7
    %v2282 = vadd.s32 %v2281, 8
    %2283 = vset.pattern.permute.xlu0 %v2282
    %2284 = vperm.xlu0 %2283, %v2273
    %v2285 = vpop.permute.xlu0 %2284
    %v2286 = vlaneseq
    %v2287 = vshrl.u32 %v2286, 7
    %v2288 = vadd.s32 %v2287, 16
    %2289 = vset.pattern.permute.xlu0 %v2288
    %2290 = vperm.xlu0 %2289, %v2273
    %v2291 = vpop.permute.xlu0 %2290
    %v2292 = vlaneseq
    %v2293 = vshrl.u32 %v2292, 7
    %v2294 = vadd.s32 %v2293, 24
    %2295 = vset.pattern.permute.xlu0 %v2294
    %2296 = vperm.xlu0 %2295, %v2273
    %v2297 = vpop.permute.xlu0 %2296
    %v2298 = vperm.slane %v113, 7
    %v2299 = vlaneseq
    %v2300 = vshrl.u32 %v2299, 7
    %2302 = vset.pattern.permute.xlu0 %v2300
    %2303 = vperm.xlu0 %2302, %v2298
    %v2304 = vpop.permute.xlu0 %2303
    %v2305 = vlaneseq
    %v2306 = vshrl.u32 %v2305, 7
    %v2307 = vadd.s32 %v2306, 8
    %2308 = vset.pattern.permute.xlu0 %v2307
    %2309 = vperm.xlu0 %2308, %v2298
    %v2310 = vpop.permute.xlu0 %2309
    %v2311 = vlaneseq
    %v2312 = vshrl.u32 %v2311, 7
    %v2313 = vadd.s32 %v2312, 16
    %2314 = vset.pattern.permute.xlu0 %v2313
    %2315 = vperm.xlu0 %2314, %v2298
    %v2316 = vpop.permute.xlu0 %2315
    %v2317 = vlaneseq
    %v2318 = vshrl.u32 %v2317, 7
    %v2319 = vadd.s32 %v2318, 24
    %2320 = vset.pattern.permute.xlu0 %v2319
    %2321 = vperm.xlu0 %2320, %v2298
    %v2322 = vpop.permute.xlu0 %2321
    %v2323 = vperm.slane %v114, 0
    %v2324 = vlaneseq
    %v2325 = vshrl.u32 %v2324, 7
    %2327 = vset.pattern.permute.xlu0 %v2325
    %2328 = vperm.xlu0 %2327, %v2323
    %v2329 = vpop.permute.xlu0 %2328
    %v2330 = vlaneseq
    %v2331 = vshrl.u32 %v2330, 7
    %v2332 = vadd.s32 %v2331, 8
    %2333 = vset.pattern.permute.xlu0 %v2332
    %2334 = vperm.xlu0 %2333, %v2323
    %v2335 = vpop.permute.xlu0 %2334
    %v2336 = vlaneseq
    %v2337 = vshrl.u32 %v2336, 7
    %v2338 = vadd.s32 %v2337, 16
    %2339 = vset.pattern.permute.xlu0 %v2338
    %2340 = vperm.xlu0 %2339, %v2323
    %v2341 = vpop.permute.xlu0 %2340
    %v2342 = vlaneseq
    %v2343 = vshrl.u32 %v2342, 7
    %v2344 = vadd.s32 %v2343, 24
    %2345 = vset.pattern.permute.xlu0 %v2344
    %2346 = vperm.xlu0 %2345, %v2323
    %v2347 = vpop.permute.xlu0 %2346
    %v2348 = vperm.slane %v114, 1
    %v2349 = vlaneseq
    %v2350 = vshrl.u32 %v2349, 7
    %2352 = vset.pattern.permute.xlu0 %v2350
    %2353 = vperm.xlu0 %2352, %v2348
    %v2354 = vpop.permute.xlu0 %2353
    %v2355 = vlaneseq
    %v2356 = vshrl.u32 %v2355, 7
    %v2357 = vadd.s32 %v2356, 8
    %2358 = vset.pattern.permute.xlu0 %v2357
    %2359 = vperm.xlu0 %2358, %v2348
    %v2360 = vpop.permute.xlu0 %2359
    %v2361 = vlaneseq
    %v2362 = vshrl.u32 %v2361, 7
    %v2363 = vadd.s32 %v2362, 16
    %2364 = vset.pattern.permute.xlu0 %v2363
    %2365 = vperm.xlu0 %2364, %v2348
    %v2366 = vpop.permute.xlu0 %2365
    %v2367 = vlaneseq
    %v2368 = vshrl.u32 %v2367, 7
    %v2369 = vadd.s32 %v2368, 24
    %2370 = vset.pattern.permute.xlu0 %v2369
    %2371 = vperm.xlu0 %2370, %v2348
    %v2372 = vpop.permute.xlu0 %2371
    %v2373 = vperm.slane %v114, 2
    %v2374 = vlaneseq
    %v2375 = vshrl.u32 %v2374, 7
    %2377 = vset.pattern.permute.xlu0 %v2375
    %2378 = vperm.xlu0 %2377, %v2373
    %v2379 = vpop.permute.xlu0 %2378
    %v2380 = vlaneseq
    %v2381 = vshrl.u32 %v2380, 7
    %v2382 = vadd.s32 %v2381, 8
    %2383 = vset.pattern.permute.xlu0 %v2382
    %2384 = vperm.xlu0 %2383, %v2373
    %v2385 = vpop.permute.xlu0 %2384
    %v2386 = vlaneseq
    %v2387 = vshrl.u32 %v2386, 7
    %v2388 = vadd.s32 %v2387, 16
    %2389 = vset.pattern.permute.xlu0 %v2388
    %2390 = vperm.xlu0 %2389, %v2373
    %v2391 = vpop.permute.xlu0 %2390
    %v2392 = vlaneseq
    %v2393 = vshrl.u32 %v2392, 7
    %v2394 = vadd.s32 %v2393, 24
    %2395 = vset.pattern.permute.xlu0 %v2394
    %2396 = vperm.xlu0 %2395, %v2373
    %v2397 = vpop.permute.xlu0 %2396
    %v2398 = vperm.slane %v114, 3
    %v2399 = vlaneseq
    %v2400 = vshrl.u32 %v2399, 7
    %2402 = vset.pattern.permute.xlu0 %v2400
    %2403 = vperm.xlu0 %2402, %v2398
    %v2404 = vpop.permute.xlu0 %2403
    %v2405 = vlaneseq
    %v2406 = vshrl.u32 %v2405, 7
    %v2407 = vadd.s32 %v2406, 8
    %2408 = vset.pattern.permute.xlu0 %v2407
    %2409 = vperm.xlu0 %2408, %v2398
    %v2410 = vpop.permute.xlu0 %2409
    %v2411 = vlaneseq
    %v2412 = vshrl.u32 %v2411, 7
    %v2413 = vadd.s32 %v2412, 16
    %2414 = vset.pattern.permute.xlu0 %v2413
    %2415 = vperm.xlu0 %2414, %v2398
    %v2416 = vpop.permute.xlu0 %2415
    %v2417 = vlaneseq
    %v2418 = vshrl.u32 %v2417, 7
    %v2419 = vadd.s32 %v2418, 24
    %2420 = vset.pattern.permute.xlu0 %v2419
    %2421 = vperm.xlu0 %2420, %v2398
    %v2422 = vpop.permute.xlu0 %2421
    %v2423 = vperm.slane %v114, 4
    %v2424 = vlaneseq
    %v2425 = vshrl.u32 %v2424, 7
    %2427 = vset.pattern.permute.xlu0 %v2425
    %2428 = vperm.xlu0 %2427, %v2423
    %v2429 = vpop.permute.xlu0 %2428
    %v2430 = vlaneseq
    %v2431 = vshrl.u32 %v2430, 7
    %v2432 = vadd.s32 %v2431, 8
    %2433 = vset.pattern.permute.xlu0 %v2432
    %2434 = vperm.xlu0 %2433, %v2423
    %v2435 = vpop.permute.xlu0 %2434
    %v2436 = vlaneseq
    %v2437 = vshrl.u32 %v2436, 7
    %v2438 = vadd.s32 %v2437, 16
    %2439 = vset.pattern.permute.xlu0 %v2438
    %2440 = vperm.xlu0 %2439, %v2423
    %v2441 = vpop.permute.xlu0 %2440
    %v2442 = vlaneseq
    %v2443 = vshrl.u32 %v2442, 7
    %v2444 = vadd.s32 %v2443, 24
    %2445 = vset.pattern.permute.xlu0 %v2444
    %2446 = vperm.xlu0 %2445, %v2423
    %v2447 = vpop.permute.xlu0 %2446
    %v2448 = vperm.slane %v114, 5
    %v2449 = vlaneseq
    %v2450 = vshrl.u32 %v2449, 7
    %2452 = vset.pattern.permute.xlu0 %v2450
    %2453 = vperm.xlu0 %2452, %v2448
    %v2454 = vpop.permute.xlu0 %2453
    %v2455 = vlaneseq
    %v2456 = vshrl.u32 %v2455, 7
    %v2457 = vadd.s32 %v2456, 8
    %2458 = vset.pattern.permute.xlu0 %v2457
    %2459 = vperm.xlu0 %2458, %v2448
    %v2460 = vpop.permute.xlu0 %2459
    %v2461 = vlaneseq
    %v2462 = vshrl.u32 %v2461, 7
    %v2463 = vadd.s32 %v2462, 16
    %2464 = vset.pattern.permute.xlu0 %v2463
    %2465 = vperm.xlu0 %2464, %v2448
    %v2466 = vpop.permute.xlu0 %2465
    %v2467 = vlaneseq
    %v2468 = vshrl.u32 %v2467, 7
    %v2469 = vadd.s32 %v2468, 24
    %2470 = vset.pattern.permute.xlu0 %v2469
    %2471 = vperm.xlu0 %2470, %v2448
    %v2472 = vpop.permute.xlu0 %2471
    %v2473 = vperm.slane %v114, 6
    %v2474 = vlaneseq
    %v2475 = vshrl.u32 %v2474, 7
    %2477 = vset.pattern.permute.xlu0 %v2475
    %2478 = vperm.xlu0 %2477, %v2473
    %v2479 = vpop.permute.xlu0 %2478
    %v2480 = vlaneseq
    %v2481 = vshrl.u32 %v2480, 7
    %v2482 = vadd.s32 %v2481, 8
    %2483 = vset.pattern.permute.xlu0 %v2482
    %2484 = vperm.xlu0 %2483, %v2473
    %v2485 = vpop.permute.xlu0 %2484
    %v2486 = vlaneseq
    %v2487 = vshrl.u32 %v2486, 7
    %v2488 = vadd.s32 %v2487, 16
    %2489 = vset.pattern.permute.xlu0 %v2488
    %2490 = vperm.xlu0 %2489, %v2473
    %v2491 = vpop.permute.xlu0 %2490
    %v2492 = vlaneseq
    %v2493 = vshrl.u32 %v2492, 7
    %v2494 = vadd.s32 %v2493, 24
    %2495 = vset.pattern.permute.xlu0 %v2494
    %2496 = vperm.xlu0 %2495, %v2473
    %v2497 = vpop.permute.xlu0 %2496
    %v2498 = vperm.slane %v114, 7
    %v2499 = vlaneseq
    %v2500 = vshrl.u32 %v2499, 7
    %2502 = vset.pattern.permute.xlu0 %v2500
    %2503 = vperm.xlu0 %2502, %v2498
    %v2504 = vpop.permute.xlu0 %2503
    %v2505 = vlaneseq
    %v2506 = vshrl.u32 %v2505, 7
    %v2507 = vadd.s32 %v2506, 8
    %2508 = vset.pattern.permute.xlu0 %v2507
    %2509 = vperm.xlu0 %2508, %v2498
    %v2510 = vpop.permute.xlu0 %2509
    %v2511 = vlaneseq
    %v2512 = vshrl.u32 %v2511, 7
    %v2513 = vadd.s32 %v2512, 16
    %2514 = vset.pattern.permute.xlu0 %v2513
    %2515 = vperm.xlu0 %2514, %v2498
    %v2516 = vpop.permute.xlu0 %2515
    %v2517 = vlaneseq
    %v2518 = vshrl.u32 %v2517, 7
    %v2519 = vadd.s32 %v2518, 24
    %2520 = vset.pattern.permute.xlu0 %v2519
    %2521 = vperm.xlu0 %2520, %v2498
    %v2522 = vpop.permute.xlu0 %2521
    %v2523 = vmul.f32 %v1213, %v2129
    %v2524 = vmul.f32 %v1214, %v2135
    %v2525 = vmul.f32 %v1215, %v2141
    %v2526 = vmul.f32 %v1216, %v2147
    %v2527 = vmul.f32 %v1217, %v2154
    %v2528 = vmul.f32 %v1218, %v2160
    %v2529 = vmul.f32 %v1219, %v2166
    %v2530 = vmul.f32 %v1220, %v2172
    %v2531 = vmul.f32 %v1221, %v2179
    %v2532 = vmul.f32 %v1222, %v2185
    %v2533 = vmul.f32 %v1223, %v2191
    %v2534 = vmul.f32 %v1224, %v2197
    %v2535 = vmul.f32 %v1225, %v2204
    %v2536 = vmul.f32 %v1226, %v2210
    %v2537 = vmul.f32 %v1227, %v2216
    %v2538 = vmul.f32 %v1228, %v2222
    %v2539 = vmul.f32 %v1229, %v2229
    %v2540 = vmul.f32 %v1230, %v2235
    %v2541 = vmul.f32 %v1231, %v2241
    %v2542 = vmul.f32 %v1232, %v2247
    %v2543 = vmul.f32 %v1233, %v2254
    %v2544 = vmul.f32 %v1234, %v2260
    %v2545 = vmul.f32 %v1235, %v2266
    %v2546 = vmul.f32 %v1236, %v2272
    %v2547 = vmul.f32 %v1237, %v2279
    %v2548 = vmul.f32 %v1238, %v2285
    %v2549 = vmul.f32 %v1239, %v2291
    %v2550 = vmul.f32 %v1240, %v2297
    %v2551 = vmul.f32 %v1241, %v2304
    %v2552 = vmul.f32 %v1242, %v2310
    %v2553 = vmul.f32 %v1243, %v2316
    %v2554 = vmul.f32 %v1244, %v2322
    %v2555 = vmul.f32 %v2523, %v2087
    %v2556 = vmul.f32 %v2524, %v2088
    %v2557 = vmul.f32 %v2525, %v2089
    %v2558 = vmul.f32 %v2526, %v2090
    %v2559 = vmul.f32 %v2527, %v2091
    %v2560 = vmul.f32 %v2528, %v2092
    %v2561 = vmul.f32 %v2529, %v2093
    %v2562 = vmul.f32 %v2530, %v2094
    %v2563 = vmul.f32 %v2531, %v2095
    %v2564 = vmul.f32 %v2532, %v2096
    %v2565 = vmul.f32 %v2533, %v2097
    %v2566 = vmul.f32 %v2534, %v2098
    %v2567 = vmul.f32 %v2535, %v2099
    %v2568 = vmul.f32 %v2536, %v2100
    %v2569 = vmul.f32 %v2537, %v2101
    %v2570 = vmul.f32 %v2538, %v2102
    %v2571 = vmul.f32 %v2539, %v2103
    %v2572 = vmul.f32 %v2540, %v2104
    %v2573 = vmul.f32 %v2541, %v2105
    %v2574 = vmul.f32 %v2542, %v2106
    %v2575 = vmul.f32 %v2543, %v2107
    %v2576 = vmul.f32 %v2544, %v2108
    %v2577 = vmul.f32 %v2545, %v2109
    %v2578 = vmul.f32 %v2546, %v2110
    %v2579 = vmul.f32 %v2547, %v2111
    %v2580 = vmul.f32 %v2548, %v2112
    %v2581 = vmul.f32 %v2549, %v2113
    %v2582 = vmul.f32 %v2550, %v2114
    %v2583 = vmul.f32 %v2551, %v2115
    %v2584 = vmul.f32 %v2552, %v2116
    %v2585 = vmul.f32 %v2553, %v2117
    %v2586 = vmul.f32 %v2554, %v2118
    %v2587 = vmul.f32 %v1341, %v2329
    %v2588 = vmul.f32 %v1342, %v2335
    %v2589 = vmul.f32 %v1343, %v2341
    %v2590 = vmul.f32 %v1344, %v2347
    %v2591 = vmul.f32 %v1345, %v2354
    %v2592 = vmul.f32 %v1346, %v2360
    %v2593 = vmul.f32 %v1347, %v2366
    %v2594 = vmul.f32 %v1348, %v2372
    %v2595 = vmul.f32 %v1349, %v2379
    %v2596 = vmul.f32 %v1350, %v2385
    %v2597 = vmul.f32 %v1351, %v2391
    %v2598 = vmul.f32 %v1352, %v2397
    %v2599 = vmul.f32 %v1353, %v2404
    %v2600 = vmul.f32 %v1354, %v2410
    %v2601 = vmul.f32 %v1355, %v2416
    %v2602 = vmul.f32 %v1356, %v2422
    %v2603 = vmul.f32 %v1357, %v2429
    %v2604 = vmul.f32 %v1358, %v2435
    %v2605 = vmul.f32 %v1359, %v2441
    %v2606 = vmul.f32 %v1360, %v2447
    %v2607 = vmul.f32 %v1361, %v2454
    %v2608 = vmul.f32 %v1362, %v2460
    %v2609 = vmul.f32 %v1363, %v2466
    %v2610 = vmul.f32 %v1364, %v2472
    %v2611 = vmul.f32 %v1365, %v2479
    %v2612 = vmul.f32 %v1366, %v2485
    %v2613 = vmul.f32 %v1367, %v2491
    %v2614 = vmul.f32 %v1368, %v2497
    %v2615 = vmul.f32 %v1369, %v2504
    %v2616 = vmul.f32 %v1370, %v2510
    %v2617 = vmul.f32 %v1371, %v2516
    %v2618 = vmul.f32 %v1372, %v2522
    %v2619 = vmul.f32 %v2587, %v2091
    %v2620 = vmul.f32 %v2588, %v2092
    %v2621 = vmul.f32 %v2589, %v2093
    %v2622 = vmul.f32 %v2590, %v2094
    %v2623 = vmul.f32 %v2591, %v2095
    %v2624 = vmul.f32 %v2592, %v2096
    %v2625 = vmul.f32 %v2593, %v2097
    %v2626 = vmul.f32 %v2594, %v2098
    %v2627 = vmul.f32 %v2595, %v2099
    %v2628 = vmul.f32 %v2596, %v2100
    %v2629 = vmul.f32 %v2597, %v2101
    %v2630 = vmul.f32 %v2598, %v2102
    %v2631 = vmul.f32 %v2599, %v2103
    %v2632 = vmul.f32 %v2600, %v2104
    %v2633 = vmul.f32 %v2601, %v2105
    %v2634 = vmul.f32 %v2602, %v2106
    %v2635 = vmul.f32 %v2603, %v2107
    %v2636 = vmul.f32 %v2604, %v2108
    %v2637 = vmul.f32 %v2605, %v2109
    %v2638 = vmul.f32 %v2606, %v2110
    %v2639 = vmul.f32 %v2607, %v2111
    %v2640 = vmul.f32 %v2608, %v2112
    %v2641 = vmul.f32 %v2609, %v2113
    %v2642 = vmul.f32 %v2610, %v2114
    %v2643 = vmul.f32 %v2611, %v2115
    %v2644 = vmul.f32 %v2612, %v2116
    %v2645 = vmul.f32 %v2613, %v2117
    %v2646 = vmul.f32 %v2614, %v2118
    %v2647 = vmul.f32 %v2615, %v2119
    %v2648 = vmul.f32 %v2616, %v2120
    %v2649 = vmul.f32 %v2617, %v2121
    %v2650 = vmul.f32 %v2618, %v2122
    %v2651 = vadd.f32 %v2555, %v2619
    %v2652 = vadd.f32 %v2556, %v2620
    %v2653 = vadd.f32 %v2557, %v2621
    %v2654 = vadd.f32 %v2558, %v2622
    %v2655 = vadd.f32 %v2559, %v2623
    %v2656 = vadd.f32 %v2560, %v2624
    %v2657 = vadd.f32 %v2561, %v2625
    %v2658 = vadd.f32 %v2562, %v2626
    %v2659 = vadd.f32 %v2563, %v2627
    %v2660 = vadd.f32 %v2564, %v2628
    %v2661 = vadd.f32 %v2565, %v2629
    %v2662 = vadd.f32 %v2566, %v2630
    %v2663 = vadd.f32 %v2567, %v2631
    %v2664 = vadd.f32 %v2568, %v2632
    %v2665 = vadd.f32 %v2569, %v2633
    %v2666 = vadd.f32 %v2570, %v2634
    %v2667 = vadd.f32 %v2571, %v2635
    %v2668 = vadd.f32 %v2572, %v2636
    %v2669 = vadd.f32 %v2573, %v2637
    %v2670 = vadd.f32 %v2574, %v2638
    %v2671 = vadd.f32 %v2575, %v2639
    %v2672 = vadd.f32 %v2576, %v2640
    %v2673 = vadd.f32 %v2577, %v2641
    %v2674 = vadd.f32 %v2578, %v2642
    %v2675 = vadd.f32 %v2579, %v2643
    %v2676 = vadd.f32 %v2580, %v2644
    %v2677 = vadd.f32 %v2581, %v2645
    %v2678 = vadd.f32 %v2582, %v2646
    %v2679 = vadd.f32 %v2583, %v2647
    %v2680 = vadd.f32 %v2584, %v2648
    %v2681 = vadd.f32 %v2585, %v2649
    %v2682 = vadd.f32 %v2586, %v2650
    %v2683 = vld [vmem:[#allocation10] sm:$0xff]
    %v2684 = vld [vmem:[#allocation10 + $0x8] sm:$0xff]
    %v2685 = vld [vmem:[#allocation10 + $0x10] sm:$0xff]
    %v2686 = vld [vmem:[#allocation10 + $0x18] sm:$0xff]
    %2687 = vmatpush.msra.mxu0 %v2666
    %2688 = vmatpush.msra.mxu0 %v2665
    %2689 = vmatpush.msra.mxu0 %v2664
    %2690 = vmatpush.msra.mxu0 %v2663
    %2691 = vmatpush.msra.mxu0 %v2662
    %2692 = vmatpush.msra.mxu0 %v2661
    %2693 = vmatpush.msra.mxu0 %v2660
    %2694 = vmatpush.msra.mxu0 %v2659
    %2695 = vmatpush.msra.mxu0 %v2658
    %2696 = vmatpush.msra.mxu0 %v2657
    %2697 = vmatpush.msra.mxu0 %v2656
    %2698 = vmatpush.msra.mxu0 %v2655
    %2699 = vmatpush.msra.mxu0 %v2654
    %2700 = vmatpush.msra.mxu0 %v2653
    %2701 = vmatpush.msra.mxu0 %v2652
    %2702 = vmatpush.msra.mxu0 %v2651
    %2703 = vmatmul.f32.gmra.mxu0 %v2683
    %v2704 = vpop.f32.mrf.mxu0
    %v2705 = vadd.f32 0.0, %v2704
    %2706 = vmatmul.f32.gmra.mxu0 %v2685
    %v2707 = vpop.f32.mrf.mxu0
    %v2708 = vadd.f32 0.0, %v2707
    %2709 = vdwg.mxu0
    %2710 = vmatpush.msra.mxu0 %v2682
    %2711 = vmatpush.msra.mxu0 %v2681
    %2712 = vmatpush.msra.mxu0 %v2680
    %2713 = vmatpush.msra.mxu0 %v2679
    %2714 = vmatpush.msra.mxu0 %v2678
    %2715 = vmatpush.msra.mxu0 %v2677
    %2716 = vmatpush.msra.mxu0 %v2676
    %2717 = vmatpush.msra.mxu0 %v2675
    %2718 = vmatpush.msra.mxu0 %v2674
    %2719 = vmatpush.msra.mxu0 %v2673
    %2720 = vmatpush.msra.mxu0 %v2672
    %2721 = vmatpush.msra.mxu0 %v2671
    %2722 = vmatpush.msra.mxu0 %v2670
    %2723 = vmatpush.msra.mxu0 %v2669
    %2724 = vmatpush.msra.mxu0 %v2668
    %2725 = vmatpush.msra.mxu0 %v2667
    %2726 = vmatmul.f32.gmra.mxu0 %v2684
    %v2727 = vpop.f32.mrf.mxu0
    %v2728 = vadd.f32 %v2705, %v2727
    %2729 = vmatmul.f32.gmra.mxu0 %v2686
    %v2730 = vpop.f32.mrf.mxu0
    %v2731 = vadd.f32 %v2708, %v2730
    %2732 = vdwg.mxu0
    %vm2733 = vcmask 261120
    %v2735 = vsel %vm2733, %v491, 0
    %v2738 = vsel %vm2733, %v492, 0
    %2740 = vmatpush.msra.mxu0 0.0
    %2741 = vmatpush.msra.mxu0 0.0
    %2742 = vmatpush.msra.mxu0 0.0
    %2743 = vmatpush.msra.mxu0 0.0
    %2744 = vmatpush.msra.mxu0 0.0
    %2745 = vmatpush.msra.mxu0 0.0
    %2746 = vmatpush.msra.mxu0 0.0
    %2747 = vmatpush.msra.mxu0 0.0
    %2748 = vmatpush.msra.mxu0 0.0
    %2749 = vmatpush.msra.mxu0 0.0
    %2750 = vmatpush.msra.mxu0 0.0
    %2751 = vmatpush.msra.mxu0 0.0
    %2752 = vmatpush.msra.mxu0 %v490
    %2753 = vmatpush.msra.mxu0 %v489
    %2754 = vmatpush.msra.mxu0 %v488
    %2755 = vmatpush.msra.mxu0 %v487
    %2756 = vmatmul.f32.gmra.mxu0 %v2735
    %v2757 = vpop.f32.mrf.mxu0
    %v2758 = vadd.f32 %v2728, %v2757
    %2759 = vmatmul.f32.gmra.mxu0 %v2738
    %v2760 = vpop.f32.mrf.mxu0
    %v2761 = vadd.f32 %v2731, %v2760
    %2762 = vdwg.mxu0
    %2763 = vst [vmem:[#allocation11] sm:$0xff] %v2758
    %2764 = vst [vmem:[#allocation11 + $0x8] sm:$0xff] %v2761
    // Predicated region
    $region42: #{tpu_custom_call.1} parent=1 // pred_check
      _
    $region43: #{tpu_custom_call.1} parent=1 // pred_check_branch
      %2766 = sbr.rel (0) target = $region45
    $region44: #{tpu_custom_call.1} parent=1 // pred_region
      %2768 = vsyncadd [#allocation4], 0
      %s2769 = sshll.u32 [#allocation11], 4
      %s2770 = int_to_ptr.vmem [resolvable:$true] %s2769
      %s2771 = sshll.u32 %s5, 4
      %s2772 = int_to_ptr.hbm [resolvable:$true] %s2771
      %2777 = dma.vmem_to_hbm [thread:$0]  %s2770, 256, %s2772, [#allocation4], 128, 128, 8
    $region45: #{tpu_custom_call.1} parent=1 // pred_fallthru
      _
    // Predicated region
    $region46: #{tpu_custom_call.1} parent=1 // pred_check
      _
    $region47: #{tpu_custom_call.1} parent=1 // pred_check_branch
      %2779 = sbr.rel (0) target = $region49
    $region48: #{tpu_custom_call.1} parent=1 // pred_region
      %2781 = dma.done [#allocation4], 256
    $region49: #{tpu_custom_call.1} parent=1 // pred_fallthru
      _
    %2782 = vsyncpa [#allocation3], 1
    %2783 = vsyncpa [#allocation6], 1
    %2784 = vsyncpa [#allocation9], 1
    %2785 = vsyncpa [#allocation4], 1

</llo_original>
